<compile_context>
chip_gen: v6e
topology: v6e:2x2x1
jax: 0.10.0
libtpu: 0.0.40
codegen_flags: <defaults>
</compile_context>

<pallas_src>
import functools

import numpy as np
import jax
import jax.numpy as jnp
from jax.experimental import pallas as pl
from jax.experimental.pallas import tpu as pltpu


# ---------------------------------------------------------------------------
# MADE mask construction (faithful numpy replica of MADE.update_masks)
# ---------------------------------------------------------------------------
def make_made_masks(input_dim_values, hidden_dims, seed=42):
    nin = len(input_dim_values)
    nout = sum(input_dim_values)
    L = len(hidden_dims)
    rng = np.random.RandomState(seed)
    m = {}
    m[-1] = rng.permutation(nin)
    for l in range(L):
        m[l] = rng.randint(m[l - 1].min(), nin - 1, size=hidden_dims[l])
    masks = [m[l - 1][:, None] <= m[l][None, :] for l in range(L)]
    masks.append(m[L - 1][:, None] < m[-1][None, :])
    if nout > nin:
        k = int(nout / nin)
        masks[-1] = np.repeat(
            masks[-1].reshape(masks[-1].shape[1], -1, 1), k, axis=2
        ).reshape(-1, nout)
    # MaskedLinear.set_mask stores mask.T -> (out_features, in_features)
    return [np.ascontiguousarray(mk.astype(np.float32).T) for mk in masks]


def _round_up(v, m):
    return (v + m - 1) // m * m


# ---------------------------------------------------------------------------
# Wrapper-side weight preparation (one-time): fold masks into the weights,
# transpose to (in, out), lane-pad every feature axis to a multiple of 128,
# re-order layer-3 columns class-major, cast weights to bf16.
# Padding is exact: padded input dims / hidden units / output groups carry
# zero weights and biases, so they contribute nothing anywhere.
# ---------------------------------------------------------------------------
def prepare_made_params(params, masks, nin, k, lane=128):
    (w1, b1), (w2, b2), (w3, b3) = params
    m1, m2, m3 = masks                           # (out, in), like set_mask

    def fold(w, m):                              # masked weight, (in, out)
        return jnp.transpose(m * w)

    e1, e2, e3 = fold(w1, m1), fold(w2, m2), fold(w3, m3)
    h1, h2 = e1.shape[1], e2.shape[1]
    nout = e3.shape[1]
    assert nout == nin * k

    ninp = _round_up(nin, lane)
    h1p, h2p = _round_up(h1, lane), _round_up(h2, lane)

    def pad2(a, rows, cols):
        return jnp.pad(a, ((0, rows - a.shape[0]), (0, cols - a.shape[1])))

    # Layer 3 in CLASS-MAJOR order: new column c*ninp + j holds the logit of
    # class c for input dim j (original column j*k + c).  Padded dims j>=nin
    # get zero columns.
    e3cm = jnp.transpose(
        jnp.pad(e3.reshape(h2, nin, k),
                ((0, h2p - h2), (0, ninp - nin), (0, 0))),
        (0, 2, 1)).reshape(h2p, k * ninp)
    b3cm = jnp.transpose(
        jnp.pad(b3.reshape(nin, k), ((0, ninp - nin), (0, 0)))
    ).reshape(1, k * ninp)

    return dict(
        w1=pad2(e1, ninp, h1p).astype(jnp.bfloat16),
        w2=pad2(e2, h1p, h2p).astype(jnp.bfloat16),
        w3=e3cm.astype(jnp.bfloat16),
        b1=jnp.pad(b1, (0, h1p - h1)).reshape(1, h1p).astype(jnp.float32),
        b2=jnp.pad(b2, (0, h2p - h2)).reshape(1, h2p).astype(jnp.float32),
        b3=b3cm.astype(jnp.float32),
        nin=nin, k=k, ninp=ninp,
    )


# ---------------------------------------------------------------------------
# Pallas kernel: 3 dense (pre-masked) bf16 MXU layers + grouped log-softmax
# gather done as K lane-dense elementwise passes (class-major score layout).
# One grid step processes a (TB, NINp) slab of the batch.
# ---------------------------------------------------------------------------
def made_kernel(x_ref, w1_ref, b1_ref, w2_ref, b2_ref, w3_ref, b3_ref,
                out_ref, *, nin, k, ninp):
    x = x_ref[...]                                   # (TB, NINp) f32 class ids

    def dense(h, w_ref, b_ref):
        # (TB, in) @ (in, out): bf16 MXU matmul, f32 accumulation, f32 bias.
        y = jax.lax.dot_general(
            h.astype(jnp.bfloat16), w_ref[...],
            (((1,), (0,)), ((), ())),
            preferred_element_type=jnp.float32)
        return y + b_ref[...]

    h1 = jnp.maximum(dense(x, w1_ref, b1_ref), 0.0)        # (TB, H1p)
    h2 = jnp.maximum(dense(h1, w2_ref, b2_ref), 0.0)       # (TB, H2p)
    scores = dense(h2, w3_ref, b3_ref)                     # (TB, K*NINp) f32

    # Chunk c is a lane-dense (TB, NINp) static slice at a 128-lane boundary:
    # the class-c logit of every input dim.
    def chunk(c):
        return scores[:, c * ninp:(c + 1) * ninp]

    # Exact per-group max stabilizer (elementwise max over the K chunks):
    # guarantees sum(exp) >= 1, so log() never produces -inf.
    m = chunk(0)
    for c in range(1, k):
        m = jnp.maximum(m, chunk(c))

    # Per-group sum(exp(s - m)) and the observed-class logit, built from
    # comparisons of the raw class ids against integer constants (exact).
    ssum = jnp.zeros_like(m)
    sel = jnp.zeros_like(m)
    for c in range(k):
        s_c = chunk(c)
        ssum = ssum + jnp.exp(s_c - m)
        sel = sel + jnp.where(x == float(c), s_c, 0.0)

    logp = sel - m - jnp.log(ssum)                         # (TB, NINp)

    # Zero out padded input dims so the wrapper-side sum over dims is exact.
    gid = jax.lax.broadcasted_iota(jnp.int32, logp.shape, 1)
    out_ref[...] = jnp.where(gid < nin, logp, 0.0)


def made_forward(x, prepped, tb=256):
    B, nin = x.shape
    ninp, k = prepped["ninp"], prepped["k"]
    assert nin == prepped["nin"]

    tb = min(tb, B)
    # No batch padding (that would be a full HBM copy of x every call);
    # require the batch to be a multiple of the batch tile instead.
    assert B % tb == 0, "batch size must be a multiple of the batch tile"
    grid = (B // tb,)

    # Lane-pad the feature axis (nin -> NINp); padded columns are zero and
    # feed zero weight rows.  TODO(synk): at production sizes feed x already
    # lane-padded from the data pipeline instead of padding here.
    xp = jnp.pad(x, ((0, 0), (0, ninp - nin)))

    def resident(a):
        # Whole array, same block every grid step -> stays resident in VMEM.
        # (For production weight sizes: single-buffer with
        #  pipeline_mode=pl.Buffered(1) / one-time DMA to halve the footprint.)
        return pl.BlockSpec(a.shape, lambda i: (0,) * a.ndim)

    w = prepped
    out = pl.pallas_call(
        functools.partial(made_kernel, nin=nin, k=k, ninp=ninp),
        out_shape=jax.ShapeDtypeStruct((B, ninp), jnp.float32),
        grid_spec=pltpu.PrefetchScalarGridSpec(
            num_scalar_prefetch=0,
            grid=grid,
            in_specs=[
                pl.BlockSpec((tb, ninp), lambda i: (i, 0)),  # x tile (pipelined)
                resident(w["w1"]), resident(w["b1"]),
                resident(w["w2"]), resident(w["b2"]),
                resident(w["w3"]), resident(w["b3"]),
            ],
            out_specs=pl.BlockSpec((tb, ninp), lambda i: (i, 0)),
        ),
        compiler_params=pltpu.CompilerParams(
            dimension_semantics=("parallel",)),     # megacore / v7x 2-TC
    )(xp, w["w1"], w["b1"], w["w2"], w["b2"], w["w3"], w["b3"])

    # Per-dim log-probs are lane-dense with zeros in padded dims; summing all
    # columns reproduces the module's sum over input dims -> (B,).
    return out.sum(axis=1)


# ---------------------------------------------------------------------------
# Pure-JAX reference (direct transcription of MADE.forward) for validation.
# ---------------------------------------------------------------------------
def made_ref(x, params, masks, nin, k):
    (w1, b1), (w2, b2), (w3, b3) = params
    m1, m2, m3 = masks
    h = jnp.maximum(x @ (m1 * w1).T + b1, 0.0)
    h = jnp.maximum(h @ (m2 * w2).T + b2, 0.0)
    scores = (h @ (m3 * w3).T + b3).reshape(x.shape[0], nin, k)
    logp = jax.nn.log_softmax(scores, axis=-1)
    xi = x.astype(jnp.int32)
    return jnp.take_along_axis(logp, xi[:, :, None], axis=-1)[..., 0].sum(axis=1)


# ---------------------------------------------------------------------------
# Deterministic parameter init (PyTorch nn.Linear style uniform)
# ---------------------------------------------------------------------------
def init_linear(key, out_f, in_f):
    kw, kb = jax.random.split(key)
    bound = 1.0 / np.sqrt(in_f)
    w = jax.random.uniform(kw, (out_f, in_f), jnp.float32, -bound, bound)
    b = jax.random.uniform(kb, (out_f,), jnp.float32, -bound, bound)
    return w, b


if __name__ == "__main__":
    # Small MADE: nin=8 input dims, each with K=4 categories -> nout=32.
    NIN, K = 8, 4
    HIDDEN = [32, 32]
    NOUT = NIN * K
    B, TB = 512, 256                                  # grid of 2 batch tiles

    key = jax.random.PRNGKey(0)
    k1, k2, k3, kx = jax.random.split(key, 4)
    hs = [NIN] + HIDDEN + [NOUT]
    params = [init_linear(kk, ho, hi)
              for kk, hi, ho in zip([k1, k2, k3], hs[:-1], hs[1:])]

    masks_np = make_made_masks([K] * NIN, HIDDEN, seed=42)
    masks = [jnp.asarray(m) for m in masks_np]

    # x holds class indices (0..K-1) stored as float32, like the torch module.
    x = jax.random.randint(kx, (B, NIN), 0, K).astype(jnp.float32)

    prepped = prepare_made_params(params, masks, NIN, K)
    made_fn = jax.jit(lambda xx: made_forward(xx, prepped, tb=TB))

    logp = made_fn(x)
    jax.block_until_ready(logp)

    ref = made_ref(x, params, masks, NIN, K)
    assert logp.shape == (B,)
    assert bool(jnp.all(jnp.isfinite(logp)))
    max_err = float(jnp.max(jnp.abs(logp - ref)))
    # Loose tolerance only because kernel weights/activations are bf16.
    assert bool(jnp.allclose(logp, ref, rtol=2e-2, atol=2e-1)), \
        f"kernel/reference mismatch, max abs err={max_err}"
    print("KERNEL_OK")
</pallas_src>

<mosaic_0001>
module attributes {stable_mosaic.version = 11 : i64} {
  func.func @made_kernel(%arg0: i32, %arg1: memref<256x128xf32, #tpu.memory_space<vmem>>, %arg2: memref<128x128xbf16, #tpu.memory_space<vmem>>, %arg3: memref<1x128xf32, #tpu.memory_space<vmem>>, %arg4: memref<128x128xbf16, #tpu.memory_space<vmem>>, %arg5: memref<1x128xf32, #tpu.memory_space<vmem>>, %arg6: memref<128x512xbf16, #tpu.memory_space<vmem>>, %arg7: memref<1x512xf32, #tpu.memory_space<vmem>>, %arg8: memref<256x128xf32, #tpu.memory_space<vmem>>) attributes {dimension_semantics = [#tpu.dimension_semantics<parallel>], iteration_bounds = array<i64: 2>, scalar_prefetch = 0 : i64, scratch_operands = 0 : i64, tpu.core_type = #tpu.core_type<tc>, window_params = [{transform_indices = @transform_0, window_bounds = array<i64: 256, 128>}, {pipeline_mode = #tpu.pipeline_mode<synchronous>, transform_indices = @transform_1, window_bounds = array<i64: 128, 128>}, {pipeline_mode = #tpu.pipeline_mode<synchronous>, transform_indices = @transform_2, window_bounds = array<i64: 1, 128>}, {pipeline_mode = #tpu.pipeline_mode<synchronous>, transform_indices = @transform_3, window_bounds = array<i64: 128, 128>}, {pipeline_mode = #tpu.pipeline_mode<synchronous>, transform_indices = @transform_4, window_bounds = array<i64: 1, 128>}, {pipeline_mode = #tpu.pipeline_mode<synchronous>, transform_indices = @transform_5, window_bounds = array<i64: 128, 512>}, {pipeline_mode = #tpu.pipeline_mode<synchronous>, transform_indices = @transform_6, window_bounds = array<i64: 1, 512>}, {transform_indices = @transform_7, window_bounds = array<i64: 256, 128>}]} {
    %c0 = arith.constant 0 : index
    %c0_0 = arith.constant 0 : index
    %0 = vector.load %arg1[%c0, %c0_0] : memref<256x128xf32, #tpu.memory_space<vmem>>, vector<256x128xf32>
    %1 = arith.truncf %0 : vector<256x128xf32> to vector<256x128xbf16>
    %c0_1 = arith.constant 0 : index
    %c0_2 = arith.constant 0 : index
    %2 = vector.load %arg2[%c0_1, %c0_2] : memref<128x128xbf16, #tpu.memory_space<vmem>>, vector<128x128xbf16>
    %cst = arith.constant dense<0.000000e+00> : vector<256x128xf32>
    %3 = tpu.matmul %1, %2, %cst {dimension_numbers = #tpu.dot_dimension_numbers<[1], [0], [0], [1], [0, 0, 1, 1], [], []>} : vector<256x128xbf16>, vector<128x128xbf16>, vector<256x128xf32> -> vector<256x128xf32>
    %c0_3 = arith.constant 0 : index
    %c0_4 = arith.constant 0 : index
    %4 = vector.load %arg3[%c0_3, %c0_4] : memref<1x128xf32, #tpu.memory_space<vmem>>, vector<1x128xf32>
    %5 = vector.broadcast %4 : vector<1x128xf32> to vector<256x128xf32>
    %6 = arith.addf %3, %5 : vector<256x128xf32>
    %cst_5 = arith.constant 0.000000e+00 : f32
    %7 = vector.broadcast %cst_5 : f32 to vector<256x128xf32>
    %8 = arith.maximumf %6, %7 : vector<256x128xf32>
    %9 = arith.truncf %8 : vector<256x128xf32> to vector<256x128xbf16>
    %c0_6 = arith.constant 0 : index
    %c0_7 = arith.constant 0 : index
    %10 = vector.load %arg4[%c0_6, %c0_7] : memref<128x128xbf16, #tpu.memory_space<vmem>>, vector<128x128xbf16>
    %cst_8 = arith.constant dense<0.000000e+00> : vector<256x128xf32>
    %11 = tpu.matmul %9, %10, %cst_8 {dimension_numbers = #tpu.dot_dimension_numbers<[1], [0], [0], [1], [0, 0, 1, 1], [], []>} : vector<256x128xbf16>, vector<128x128xbf16>, vector<256x128xf32> -> vector<256x128xf32>
    %c0_9 = arith.constant 0 : index
    %c0_10 = arith.constant 0 : index
    %12 = vector.load %arg5[%c0_9, %c0_10] : memref<1x128xf32, #tpu.memory_space<vmem>>, vector<1x128xf32>
    %13 = vector.broadcast %12 : vector<1x128xf32> to vector<256x128xf32>
    %14 = arith.addf %11, %13 : vector<256x128xf32>
    %cst_11 = arith.constant 0.000000e+00 : f32
    %15 = vector.broadcast %cst_11 : f32 to vector<256x128xf32>
    %16 = arith.maximumf %14, %15 : vector<256x128xf32>
    %17 = arith.truncf %16 : vector<256x128xf32> to vector<256x128xbf16>
    %c0_12 = arith.constant 0 : index
    %c0_13 = arith.constant 0 : index
    %18 = vector.load %arg6[%c0_12, %c0_13] : memref<128x512xbf16, #tpu.memory_space<vmem>>, vector<128x512xbf16>
    %cst_14 = arith.constant dense<0.000000e+00> : vector<256x512xf32>
    %19 = tpu.matmul %17, %18, %cst_14 {dimension_numbers = #tpu.dot_dimension_numbers<[1], [0], [0], [1], [0, 0, 1, 1], [], []>} : vector<256x128xbf16>, vector<128x512xbf16>, vector<256x512xf32> -> vector<256x512xf32>
    %c0_15 = arith.constant 0 : index
    %c0_16 = arith.constant 0 : index
    %20 = vector.load %arg7[%c0_15, %c0_16] : memref<1x512xf32, #tpu.memory_space<vmem>>, vector<1x512xf32>
    %21 = vector.broadcast %20 : vector<1x512xf32> to vector<256x512xf32>
    %22 = arith.addf %19, %21 : vector<256x512xf32>
    %23 = vector.extract_strided_slice %22 {offsets = [0, 0], sizes = [256, 128], strides = [1, 1]} : vector<256x512xf32> to vector<256x128xf32>
    %24 = vector.extract_strided_slice %22 {offsets = [0, 128], sizes = [256, 128], strides = [1, 1]} : vector<256x512xf32> to vector<256x128xf32>
    %25 = arith.maximumf %23, %24 : vector<256x128xf32>
    %26 = vector.extract_strided_slice %22 {offsets = [0, 256], sizes = [256, 128], strides = [1, 1]} : vector<256x512xf32> to vector<256x128xf32>
    %27 = arith.maximumf %25, %26 : vector<256x128xf32>
    %28 = vector.extract_strided_slice %22 {offsets = [0, 384], sizes = [256, 128], strides = [1, 1]} : vector<256x512xf32> to vector<256x128xf32>
    %29 = arith.maximumf %27, %28 : vector<256x128xf32>
    %cst_17 = arith.constant 0.000000e+00 : f32
    %30 = vector.broadcast %cst_17 : f32 to vector<256x128xf32>
    %cst_18 = arith.constant 0.000000e+00 : f32
    %31 = vector.broadcast %cst_18 : f32 to vector<256x128xf32>
    %32 = vector.extract_strided_slice %22 {offsets = [0, 0], sizes = [256, 128], strides = [1, 1]} : vector<256x512xf32> to vector<256x128xf32>
    %33 = arith.subf %32, %29 : vector<256x128xf32>
    %34 = math.exp %33 : vector<256x128xf32>
    %35 = arith.addf %30, %34 : vector<256x128xf32>
    %cst_19 = arith.constant 0.000000e+00 : f32
    %36 = vector.broadcast %cst_19 : f32 to vector<256x128xf32>
    %37 = arith.cmpf oeq, %0, %36 : vector<256x128xf32>
    %cst_20 = arith.constant 0.000000e+00 : f32
    %38 = vector.broadcast %cst_20 : f32 to vector<256x128xf32>
    %39 = arith.select %37, %32, %38 : vector<256x128xi1>, vector<256x128xf32>
    %40 = arith.addf %31, %39 : vector<256x128xf32>
    %41 = vector.extract_strided_slice %22 {offsets = [0, 128], sizes = [256, 128], strides = [1, 1]} : vector<256x512xf32> to vector<256x128xf32>
    %42 = arith.subf %41, %29 : vector<256x128xf32>
    %43 = math.exp %42 : vector<256x128xf32>
    %44 = arith.addf %35, %43 : vector<256x128xf32>
    %cst_21 = arith.constant 1.000000e+00 : f32
    %45 = vector.broadcast %cst_21 : f32 to vector<256x128xf32>
    %46 = arith.cmpf oeq, %0, %45 : vector<256x128xf32>
    %cst_22 = arith.constant 0.000000e+00 : f32
    %47 = vector.broadcast %cst_22 : f32 to vector<256x128xf32>
    %48 = arith.select %46, %41, %47 : vector<256x128xi1>, vector<256x128xf32>
    %49 = arith.addf %40, %48 : vector<256x128xf32>
    %50 = vector.extract_strided_slice %22 {offsets = [0, 256], sizes = [256, 128], strides = [1, 1]} : vector<256x512xf32> to vector<256x128xf32>
    %51 = arith.subf %50, %29 : vector<256x128xf32>
    %52 = math.exp %51 : vector<256x128xf32>
    %53 = arith.addf %44, %52 : vector<256x128xf32>
    %cst_23 = arith.constant 2.000000e+00 : f32
    %54 = vector.broadcast %cst_23 : f32 to vector<256x128xf32>
    %55 = arith.cmpf oeq, %0, %54 : vector<256x128xf32>
    %cst_24 = arith.constant 0.000000e+00 : f32
    %56 = vector.broadcast %cst_24 : f32 to vector<256x128xf32>
    %57 = arith.select %55, %50, %56 : vector<256x128xi1>, vector<256x128xf32>
    %58 = arith.addf %49, %57 : vector<256x128xf32>
    %59 = vector.extract_strided_slice %22 {offsets = [0, 384], sizes = [256, 128], strides = [1, 1]} : vector<256x512xf32> to vector<256x128xf32>
    %60 = arith.subf %59, %29 : vector<256x128xf32>
    %61 = math.exp %60 : vector<256x128xf32>
    %62 = arith.addf %53, %61 : vector<256x128xf32>
    %cst_25 = arith.constant 3.000000e+00 : f32
    %63 = vector.broadcast %cst_25 : f32 to vector<256x128xf32>
    %64 = arith.cmpf oeq, %0, %63 : vector<256x128xf32>
    %cst_26 = arith.constant 0.000000e+00 : f32
    %65 = vector.broadcast %cst_26 : f32 to vector<256x128xf32>
    %66 = arith.select %64, %59, %65 : vector<256x128xi1>, vector<256x128xf32>
    %67 = arith.addf %58, %66 : vector<256x128xf32>
    %68 = arith.subf %67, %29 : vector<256x128xf32>
    %69 = math.log %62 : vector<256x128xf32>
    %70 = arith.subf %68, %69 : vector<256x128xf32>
    %71 = tpu.iota {dimensions = array<i32: 1>} : vector<256x128xi32>
    %c8_i32 = arith.constant 8 : i32
    %72 = vector.broadcast %c8_i32 : i32 to vector<256x128xi32>
    %73 = arith.cmpi slt, %71, %72 : vector<256x128xi32>
    %cst_27 = arith.constant 0.000000e+00 : f32
    %74 = vector.broadcast %cst_27 : f32 to vector<256x128xf32>
    %75 = arith.select %73, %70, %74 : vector<256x128xi1>, vector<256x128xf32>
    %c0_28 = arith.constant 0 : index
    %c0_29 = arith.constant 0 : index
    %76 = vector.load %arg8[%c0_28, %c0_29] : memref<256x128xf32, #tpu.memory_space<vmem>>, vector<256x128xf32>
    tpu.vector_store %arg8[%c0_28, %c0_29], %75 {strides = array<i32>} : memref<256x128xf32, #tpu.memory_space<vmem>>, vector<256x128xf32>,
    return
  }
  func.func @transform_0(%arg0: i32) -> (i32, i32) {
    %c0_i32 = arith.constant 0 : i32
    %c0_i32_0 = arith.constant 0 : i32
    return %arg0, %c0_i32 : i32, i32
  }
  func.func @transform_1(%arg0: i32) -> (i32, i32) {
    %c0_i32 = arith.constant 0 : i32
    %c0_i32_0 = arith.constant 0 : i32
    %c0_i32_1 = arith.constant 0 : i32
    return %c0_i32, %c0_i32_0 : i32, i32
  }
  func.func @transform_2(%arg0: i32) -> (i32, i32) {
    %c0_i32 = arith.constant 0 : i32
    %c0_i32_0 = arith.constant 0 : i32
    %c0_i32_1 = arith.constant 0 : i32
    return %c0_i32, %c0_i32_0 : i32, i32
  }
  func.func @transform_3(%arg0: i32) -> (i32, i32) {
    %c0_i32 = arith.constant 0 : i32
    %c0_i32_0 = arith.constant 0 : i32
    %c0_i32_1 = arith.constant 0 : i32
    return %c0_i32, %c0_i32_0 : i32, i32
  }
  func.func @transform_4(%arg0: i32) -> (i32, i32) {
    %c0_i32 = arith.constant 0 : i32
    %c0_i32_0 = arith.constant 0 : i32
    %c0_i32_1 = arith.constant 0 : i32
    return %c0_i32, %c0_i32_0 : i32, i32
  }
  func.func @transform_5(%arg0: i32) -> (i32, i32) {
    %c0_i32 = arith.constant 0 : i32
    %c0_i32_0 = arith.constant 0 : i32
    %c0_i32_1 = arith.constant 0 : i32
    return %c0_i32, %c0_i32_0 : i32, i32
  }
  func.func @transform_6(%arg0: i32) -> (i32, i32) {
    %c0_i32 = arith.constant 0 : i32
    %c0_i32_0 = arith.constant 0 : i32
    %c0_i32_1 = arith.constant 0 : i32
    return %c0_i32, %c0_i32_0 : i32, i32
  }
  func.func @transform_7(%arg0: i32) -> (i32, i32) {
    %c0_i32 = arith.constant 0 : i32
    %c0_i32_0 = arith.constant 0 : i32
    return %arg0, %c0_i32 : i32, i32
  }
}

</mosaic_0001>

<llo_original>
// kernel: _lambda_.1
$region0: #{_lambda_.1}
  #allocation0 [shape = 'u32[]', space=smem, size = 0x4, offset = 0x4, fixed_abs, tag = 'smem constant byte address 0x4 - core index']
  #allocation1 [shape = 'u32[144,128]{1,0:T(1,128)}', space=vmem, size = 0x12000, scoped, tag = 'internal scratch']
  %s0 = inlined_call_operand.vmem [shape: f32[512,128], index: 0, kind: input, shape index: {}]
  %s1 = inlined_call_operand.vmem [shape: bf16[128,128], index: 1, kind: input, shape index: {}]
  %s2 = inlined_call_operand.vmem [shape: f32[1,128], index: 2, kind: input, shape index: {}]
  %s3 = inlined_call_operand.vmem [shape: bf16[128,128], index: 3, kind: input, shape index: {}]
  %s4 = inlined_call_operand.vmem [shape: f32[1,128], index: 4, kind: input, shape index: {}]
  %s5 = inlined_call_operand.vmem [shape: bf16[128,512], index: 5, kind: input, shape index: {}]
  %s6 = inlined_call_operand.vmem [shape: f32[1,512], index: 6, kind: input, shape index: {}]
  %s7 = inlined_call_operand.vmem [shape: f32[512,128], index: 7, kind: output, shape index: {}]
  %s8 = sld [smem:[#allocation0]]
  $region61: #{_lambda_.1} parent=0
    _
  %s10 = ssub.s32 1, %s8
  %s11 = scalar_select 0, %s10, %s8
  loop: start=0, step=1, limit=4
  $region2: #{_lambda_.1} parent=0 // loop_pre_header
    _
  $region3: #{_lambda_.1} parent=0 // loop_header
    %s13 = sphi 0, %s17
    %p14 = scmp.ge.s32.totalorder %s13, 4
    %s23 = sphi 0, %s25
    %s26 = sphi 0, %s23
    %s27 = sphi 0, %s26
    %s43 = sphi 0, %s27
    %s47 = sphi 0, %s47
    %s49 = sphi 0, %s47
    %s50 = sphi 0, %s49
    %s64 = sphi 0, %s50
    %s68 = sphi 0, %s68
    %s70 = sphi 0, %s68
    %s71 = sphi 0, %s70
    %s85 = sphi 0, %s71
    %s89 = sphi 0, %s89
    %s91 = sphi 0, %s89
    %s92 = sphi 0, %s91
    %s106 = sphi 0, %s92
    %s110 = sphi 0, %s110
    %s112 = sphi 0, %s110
    %s113 = sphi 0, %s112
    %s127 = sphi 0, %s113
    %s131 = sphi 0, %s131
    %s133 = sphi 0, %s131
    %s134 = sphi 0, %s133
    %s148 = sphi 0, %s134
    %s152 = sphi 0, %s152
    %s154 = sphi 0, %s152
    %s155 = sphi 0, %s154
    %s169 = sphi 0, %s155
    %s175 = sphi 0, %s177
    %s178 = sphi 0, %s175
    %s179 = sphi 0, %s178
    %s195 = sphi 0, %s179
  $region4: #{_lambda_.1} parent=0 // loop_header_branch
    %16 = sbr.rel (%p14) target = $region8
  $region5: #{_lambda_.1} parent=0 // loop_body
    %s18 = ssub.s32 %s13, 1
    %s19 = ssub.s32 %s13, 2
    %s20 = sadd.s32 %s13, 1
    %s21 = ssub.s32 %s13, %s20
    %p22 = scmp.eq.s32.totalorder %s21, 0
    %s24 = sadd.s32 %s23, 1
    %s25 = scalar_select %p22, %s23, %s24
    %p28 = pneg %p22
    %p29 = scmp.eq.s32.totalorder %s13, 1
    %p30 = por %p28, %p29
    %p31 = scmp.ne.s32.totalorder %s23, %s26
    %p32 = scmp.eq.s32.totalorder %s13, 0
    %p33 = por %p31, %p32
    %p34 = scmp.ne.s32.totalorder %s23, %s26
    %p35 = scmp.eq.s32.totalorder %s18, 1
    %p36 = por %p34, %p35
    %p37 = scmp.ne.s32.totalorder %s26, %s27
    %p38 = scmp.eq.s32.totalorder %s18, 0
    %p39 = por %p37, %p38
    %p40 = scmp.ne.s32.totalorder %s26, %s27
    %p41 = scmp.eq.s32.totalorder %s19, 1
    %p42 = por %p40, %p41
    %p44 = scmp.ne.s32.totalorder %s27, %s43
    %p45 = scmp.eq.s32.totalorder %s19, 0
    %p46 = por %p44, %p45
    %s48 = sadd.s32 %s47, 1
    %p51 = scmp.eq.s32.totalorder %s13, 1
    %p52 = scmp.ne.s32.totalorder %s47, %s49
    %p53 = scmp.eq.s32.totalorder %s13, 0
    %p54 = por %p52, %p53
    %p55 = scmp.ne.s32.totalorder %s47, %s49
    %p56 = scmp.eq.s32.totalorder %s18, 1
    %p57 = por %p55, %p56
    %p58 = scmp.ne.s32.totalorder %s49, %s50
    %p59 = scmp.eq.s32.totalorder %s18, 0
    %p60 = por %p58, %p59
    %p61 = scmp.ne.s32.totalorder %s49, %s50
    %p62 = scmp.eq.s32.totalorder %s19, 1
    %p63 = por %p61, %p62
    %p65 = scmp.ne.s32.totalorder %s50, %s64
    %p66 = scmp.eq.s32.totalorder %s19, 0
    %p67 = por %p65, %p66
    %s69 = sadd.s32 %s68, 1
    %p72 = scmp.eq.s32.totalorder %s13, 1
    %p73 = scmp.ne.s32.totalorder %s68, %s70
    %p74 = scmp.eq.s32.totalorder %s13, 0
    %p75 = por %p73, %p74
    %p76 = scmp.ne.s32.totalorder %s68, %s70
    %p77 = scmp.eq.s32.totalorder %s18, 1
    %p78 = por %p76, %p77
    %p79 = scmp.ne.s32.totalorder %s70, %s71
    %p80 = scmp.eq.s32.totalorder %s18, 0
    %p81 = por %p79, %p80
    %p82 = scmp.ne.s32.totalorder %s70, %s71
    %p83 = scmp.eq.s32.totalorder %s19, 1
    %p84 = por %p82, %p83
    %p86 = scmp.ne.s32.totalorder %s71, %s85
    %p87 = scmp.eq.s32.totalorder %s19, 0
    %p88 = por %p86, %p87
    %s90 = sadd.s32 %s89, 1
    %p93 = scmp.eq.s32.totalorder %s13, 1
    %p94 = scmp.ne.s32.totalorder %s89, %s91
    %p95 = scmp.eq.s32.totalorder %s13, 0
    %p96 = por %p94, %p95
    %p97 = scmp.ne.s32.totalorder %s89, %s91
    %p98 = scmp.eq.s32.totalorder %s18, 1
    %p99 = por %p97, %p98
    %p100 = scmp.ne.s32.totalorder %s91, %s92
    %p101 = scmp.eq.s32.totalorder %s18, 0
    %p102 = por %p100, %p101
    %p103 = scmp.ne.s32.totalorder %s91, %s92
    %p104 = scmp.eq.s32.totalorder %s19, 1
    %p105 = por %p103, %p104
    %p107 = scmp.ne.s32.totalorder %s92, %s106
    %p108 = scmp.eq.s32.totalorder %s19, 0
    %p109 = por %p107, %p108
    %s111 = sadd.s32 %s110, 1
    %p114 = scmp.eq.s32.totalorder %s13, 1
    %p115 = scmp.ne.s32.totalorder %s110, %s112
    %p116 = scmp.eq.s32.totalorder %s13, 0
    %p117 = por %p115, %p116
    %p118 = scmp.ne.s32.totalorder %s110, %s112
    %p119 = scmp.eq.s32.totalorder %s18, 1
    %p120 = por %p118, %p119
    %p121 = scmp.ne.s32.totalorder %s112, %s113
    %p122 = scmp.eq.s32.totalorder %s18, 0
    %p123 = por %p121, %p122
    %p124 = scmp.ne.s32.totalorder %s112, %s113
    %p125 = scmp.eq.s32.totalorder %s19, 1
    %p126 = por %p124, %p125
    %p128 = scmp.ne.s32.totalorder %s113, %s127
    %p129 = scmp.eq.s32.totalorder %s19, 0
    %p130 = por %p128, %p129
    %s132 = sadd.s32 %s131, 1
    %p135 = scmp.eq.s32.totalorder %s13, 1
    %p136 = scmp.ne.s32.totalorder %s131, %s133
    %p137 = scmp.eq.s32.totalorder %s13, 0
    %p138 = por %p136, %p137
    %p139 = scmp.ne.s32.totalorder %s131, %s133
    %p140 = scmp.eq.s32.totalorder %s18, 1
    %p141 = por %p139, %p140
    %p142 = scmp.ne.s32.totalorder %s133, %s134
    %p143 = scmp.eq.s32.totalorder %s18, 0
    %p144 = por %p142, %p143
    %p145 = scmp.ne.s32.totalorder %s133, %s134
    %p146 = scmp.eq.s32.totalorder %s19, 1
    %p147 = por %p145, %p146
    %p149 = scmp.ne.s32.totalorder %s134, %s148
    %p150 = scmp.eq.s32.totalorder %s19, 0
    %p151 = por %p149, %p150
    %s153 = sadd.s32 %s152, 1
    %p156 = scmp.eq.s32.totalorder %s13, 1
    %p157 = scmp.ne.s32.totalorder %s152, %s154
    %p158 = scmp.eq.s32.totalorder %s13, 0
    %p159 = por %p157, %p158
    %p160 = scmp.ne.s32.totalorder %s152, %s154
    %p161 = scmp.eq.s32.totalorder %s18, 1
    %p162 = por %p160, %p161
    %p163 = scmp.ne.s32.totalorder %s154, %s155
    %p164 = scmp.eq.s32.totalorder %s18, 0
    %p165 = por %p163, %p164
    %p166 = scmp.ne.s32.totalorder %s154, %s155
    %p167 = scmp.eq.s32.totalorder %s19, 1
    %p168 = por %p166, %p167
    %p170 = scmp.ne.s32.totalorder %s155, %s169
    %p171 = scmp.eq.s32.totalorder %s19, 0
    %p172 = por %p170, %p171
    %s173 = ssub.s32 %s13, %s20
    %p174 = scmp.eq.s32.totalorder %s173, 0
    %s176 = sadd.s32 %s175, 1
    %s177 = scalar_select %p174, %s175, %s176
    %p180 = pneg %p174
    %p181 = scmp.eq.s32.totalorder %s13, 1
    %p182 = por %p180, %p181
    %p183 = scmp.ne.s32.totalorder %s175, %s178
    %p184 = scmp.eq.s32.totalorder %s13, 0
    %p185 = por %p183, %p184
    %p186 = scmp.ne.s32.totalorder %s175, %s178
    %p187 = scmp.eq.s32.totalorder %s18, 1
    %p188 = por %p186, %p187
    %p189 = scmp.ne.s32.totalorder %s178, %s179
    %p190 = scmp.eq.s32.totalorder %s18, 0
    %p191 = por %p189, %p190
    %p192 = scmp.ne.s32.totalorder %s178, %s179
    %p193 = scmp.eq.s32.totalorder %s19, 1
    %p194 = por %p192, %p193
    %p196 = scmp.ne.s32.totalorder %s179, %s195
    %p197 = scmp.eq.s32.totalorder %s19, 0
    %p198 = por %p196, %p197
    %p199 = scmp.le.s32.totalorder 1, %s13
    %p200 = scmp.lt.s32.totalorder %s13, 3
    %p201 = pnand %p199, %p200
    %p202 = pneg %p201
    // Predicated region
    $region9: #{_lambda_.1} parent=5 // pred_check
      _
    $region10: #{_lambda_.1} parent=5 // pred_check_branch
      %204 = sbr.rel (%p201) target = $region12
    $region11: #{_lambda_.1} parent=5 // pred_region
      %s205 = ssub.s32 %s13, 1
      // Predicated region
      $region13: #{_lambda_.1} parent=11 // pred_check
        %p206 = pneg %p60
      $region14: #{_lambda_.1} parent=11 // pred_check_branch
        %208 = sbr.rel (%p206) target = $region16
      $region15: #{_lambda_.1} parent=11 // pred_region
        _
      $region16: #{_lambda_.1} parent=11 // pred_fallthru
        _
      // Predicated region
      $region17: #{_lambda_.1} parent=11 // pred_check
        %p209 = pneg %p81
      $region18: #{_lambda_.1} parent=11 // pred_check_branch
        %211 = sbr.rel (%p209) target = $region20
      $region19: #{_lambda_.1} parent=11 // pred_region
        _
      $region20: #{_lambda_.1} parent=11 // pred_fallthru
        _
      // Predicated region
      $region21: #{_lambda_.1} parent=11 // pred_check
        %p212 = pneg %p102
      $region22: #{_lambda_.1} parent=11 // pred_check_branch
        %214 = sbr.rel (%p212) target = $region24
      $region23: #{_lambda_.1} parent=11 // pred_region
        _
      $region24: #{_lambda_.1} parent=11 // pred_fallthru
        _
      // Predicated region
      $region25: #{_lambda_.1} parent=11 // pred_check
        %p215 = pneg %p123
      $region26: #{_lambda_.1} parent=11 // pred_check_branch
        %217 = sbr.rel (%p215) target = $region28
      $region27: #{_lambda_.1} parent=11 // pred_region
        _
      $region28: #{_lambda_.1} parent=11 // pred_fallthru
        _
      // Predicated region
      $region29: #{_lambda_.1} parent=11 // pred_check
        %p218 = pneg %p144
      $region30: #{_lambda_.1} parent=11 // pred_check_branch
        %220 = sbr.rel (%p218) target = $region32
      $region31: #{_lambda_.1} parent=11 // pred_region
        _
      $region32: #{_lambda_.1} parent=11 // pred_fallthru
        _
      // Predicated region
      $region33: #{_lambda_.1} parent=11 // pred_check
        %p221 = pneg %p165
      $region34: #{_lambda_.1} parent=11 // pred_check_branch
        %223 = sbr.rel (%p221) target = $region36
      $region35: #{_lambda_.1} parent=11 // pred_region
        _
      $region36: #{_lambda_.1} parent=11 // pred_fallthru
        _
    $region12: #{_lambda_.1} parent=5 // pred_fallthru
      _
    %p224 = scmp.lt.s32.totalorder %s13, 2
    // Predicated region
    $region37: #{_lambda_.1} parent=5 // pred_check
      %p225 = pneg %p224
    $region38: #{_lambda_.1} parent=5 // pred_check_branch
      %227 = sbr.rel (%p225) target = $region40
    $region39: #{_lambda_.1} parent=5 // pred_region
      // Predicated region
      $region41: #{_lambda_.1} parent=39 // pred_check
        %p228 = pneg %p33
      $region42: #{_lambda_.1} parent=39 // pred_check_branch
        %230 = sbr.rel (%p228) target = $region44
      $region43: #{_lambda_.1} parent=39 // pred_region
        %s231 = smul.u32 32, %s13
        %p232 = scmp.lt.s32.totalorder %s231, 63
        %s233 = scalar_select %p232, %s231, 63
        %s234 = smul.addr %s233, 8
        %s235 = scalar_lea.vmem %s0, %s234
        %s236 = smul.u32 32, %s13
      $region44: #{_lambda_.1} parent=39 // pred_fallthru
        _
    $region40: #{_lambda_.1} parent=5 // pred_fallthru
      _
    %p237 = scmp.le.s32.totalorder 1, %s13
    %p238 = scmp.lt.s32.totalorder %s13, 3
    %p239 = pnand %p237, %p238
    %p240 = pneg %p239
    // Predicated region
    $region45: #{_lambda_.1} parent=5 // pred_check
      _
    $region46: #{_lambda_.1} parent=5 // pred_check_branch
      %242 = sbr.rel (%p239) target = $region48
    $region47: #{_lambda_.1} parent=5 // pred_region
      %s243 = ssub.s32 %s13, 1
      %s244 = smul.u32 32, %s18
      %p245 = scmp.lt.s32.totalorder %s244, 63
      %s246 = scalar_select %p245, %s244, 63
      %s247 = smul.addr %s246, 8
      %s248 = scalar_lea.vmem %s0, %s247
      %p249 = pneg %p39
      %p250 = pneg %p36
      %p251 = pneg %p60
      %p252 = pneg %p57
      %p253 = pneg %p81
      %p254 = pneg %p78
      %p255 = pneg %p102
      %p256 = pneg %p99
      %p257 = pneg %p123
      %p258 = pneg %p120
      %p259 = pneg %p144
      %p260 = pneg %p141
      %p261 = pneg %p165
      %p262 = pneg %p162
      %p263 = pneg %p191
      %p264 = pneg %p188
      %s265 = smul.u32 32, %s18
      %p266 = scmp.lt.s32.totalorder %s265, 63
      %s267 = scalar_select %p266, %s265, 63
      %s268 = smul.addr %s267, 8
      %s269 = scalar_lea.vmem %s7, %s268
      %s270 = smul.u32 32, %s18
      %p271 = scmp.lt.s32.totalorder %s270, 63
      %s272 = scalar_select %p271, %s270, 63
      %s273 = smul.addr %s272, 8
      %s274 = scalar_lea.vmem %s0, %s273
      %s275 = smul.u32 32, %s18
      %s276 = smul.u32 32, %s18
      %p277 = scmp.lt.s32.totalorder %s276, 63
      %s278 = scalar_select %p277, %s276, 63
      %s279 = smul.addr %s278, 8
      %s280 = scalar_lea.vmem %s7, %s279
      %s281 = smul.u32 32, %s18
      %v283 = vld [vmem:[%s274] sm:$0xff]
      %v284 = vld [vmem:[%s274 + $0x8] sm:$0xff]
      %v285 = vld [vmem:[%s274 + $0x10] sm:$0xff]
      %v286 = vld [vmem:[%s274 + $0x18] sm:$0xff]
      %v287 = vld [vmem:[%s274 + $0x20] sm:$0xff]
      %v288 = vld [vmem:[%s274 + $0x28] sm:$0xff]
      %v289 = vld [vmem:[%s274 + $0x30] sm:$0xff]
      %v290 = vld [vmem:[%s274 + $0x38] sm:$0xff]
      %v291 = vld [vmem:[%s274 + $0x40] sm:$0xff]
      %v292 = vld [vmem:[%s274 + $0x48] sm:$0xff]
      %v293 = vld [vmem:[%s274 + $0x50] sm:$0xff]
      %v294 = vld [vmem:[%s274 + $0x58] sm:$0xff]
      %v295 = vld [vmem:[%s274 + $0x60] sm:$0xff]
      %v296 = vld [vmem:[%s274 + $0x68] sm:$0xff]
      %v297 = vld [vmem:[%s274 + $0x70] sm:$0xff]
      %v298 = vld [vmem:[%s274 + $0x78] sm:$0xff]
      %v299 = vld [vmem:[%s274 + $0x80] sm:$0xff]
      %v300 = vld [vmem:[%s274 + $0x88] sm:$0xff]
      %v301 = vld [vmem:[%s274 + $0x90] sm:$0xff]
      %v302 = vld [vmem:[%s274 + $0x98] sm:$0xff]
      %v303 = vld [vmem:[%s274 + $0xa0] sm:$0xff]
      %v304 = vld [vmem:[%s274 + $0xa8] sm:$0xff]
      %v305 = vld [vmem:[%s274 + $0xb0] sm:$0xff]
      %v306 = vld [vmem:[%s274 + $0xb8] sm:$0xff]
      %v307 = vld [vmem:[%s274 + $0xc0] sm:$0xff]
      %v308 = vld [vmem:[%s274 + $0xc8] sm:$0xff]
      %v309 = vld [vmem:[%s274 + $0xd0] sm:$0xff]
      %v310 = vld [vmem:[%s274 + $0xd8] sm:$0xff]
      %v311 = vld [vmem:[%s274 + $0xe0] sm:$0xff]
      %v312 = vld [vmem:[%s274 + $0xe8] sm:$0xff]
      %v313 = vld [vmem:[%s274 + $0xf0] sm:$0xff]
      %v314 = vld [vmem:[%s274 + $0xf8] sm:$0xff]
      %v315 = vpack.c.bf16 %v284, %v283
      %v316 = vpack.c.bf16 %v286, %v285
      %v317 = vpack.c.bf16 %v288, %v287
      %v318 = vpack.c.bf16 %v290, %v289
      %v319 = vpack.c.bf16 %v292, %v291
      %v320 = vpack.c.bf16 %v294, %v293
      %v321 = vpack.c.bf16 %v296, %v295
      %v322 = vpack.c.bf16 %v298, %v297
      %v323 = vpack.c.bf16 %v300, %v299
      %v324 = vpack.c.bf16 %v302, %v301
      %v325 = vpack.c.bf16 %v304, %v303
      %v326 = vpack.c.bf16 %v306, %v305
      %v327 = vpack.c.bf16 %v308, %v307
      %v328 = vpack.c.bf16 %v310, %v309
      %v329 = vpack.c.bf16 %v312, %v311
      %v330 = vpack.c.bf16 %v314, %v313
      %v331 = vld [vmem:[%s1] sm:$0xf]
      %v332 = vld [vmem:[%s1 + $0x4] sm:$0xf]
      %v333 = vld [vmem:[%s1 + $0x8] sm:$0xf]
      %v334 = vld [vmem:[%s1 + $0xc] sm:$0xf]
      %v335 = vld [vmem:[%s1 + $0x10] sm:$0xf]
      %v336 = vld [vmem:[%s1 + $0x14] sm:$0xf]
      %v337 = vld [vmem:[%s1 + $0x18] sm:$0xf]
      %v338 = vld [vmem:[%s1 + $0x1c] sm:$0xf]
      %v339 = vld [vmem:[%s1 + $0x20] sm:$0xf]
      %v340 = vld [vmem:[%s1 + $0x24] sm:$0xf]
      %v341 = vld [vmem:[%s1 + $0x28] sm:$0xf]
      %v342 = vld [vmem:[%s1 + $0x2c] sm:$0xf]
      %v343 = vld [vmem:[%s1 + $0x30] sm:$0xf]
      %v344 = vld [vmem:[%s1 + $0x34] sm:$0xf]
      %v345 = vld [vmem:[%s1 + $0x38] sm:$0xf]
      %v346 = vld [vmem:[%s1 + $0x3c] sm:$0xf]
      %v347 = vld [vmem:[%s2] sm:$0x1]
      %v349 = vlaneseq
      %v350 = vshrl.u32 %v349, 7
      %v351 = vsub.s32 0, %v350
      %v352 = vrot.slane %v347, %v351
      %v370 = vunpack.c.l.b16 %v331
      %v371 = vunpack.c.l.b16 %v332
      %v372 = vunpack.c.l.b16 %v333
      %v373 = vunpack.c.l.b16 %v334
      %v374 = vunpack.c.l.b16 %v335
      %v375 = vunpack.c.l.b16 %v336
      %v376 = vunpack.c.l.b16 %v337
      %v377 = vunpack.c.l.b16 %v338
      %v378 = vunpack.c.l.b16 %v339
      %v379 = vunpack.c.l.b16 %v340
      %v380 = vunpack.c.l.b16 %v341
      %v381 = vunpack.c.l.b16 %v342
      %v382 = vunpack.c.l.b16 %v343
      %v383 = vunpack.c.l.b16 %v344
      %v384 = vunpack.c.l.b16 %v345
      %v385 = vunpack.c.l.b16 %v346
      %v386 = vpack.c.b16 %v371, %v370
      %v387 = vpack.c.b16 %v373, %v372
      %v388 = vpack.c.b16 %v375, %v374
      %v389 = vpack.c.b16 %v377, %v376
      %v390 = vpack.c.b16 %v379, %v378
      %v391 = vpack.c.b16 %v381, %v380
      %v392 = vpack.c.b16 %v383, %v382
      %v393 = vpack.c.b16 %v385, %v384
      %402 = vmatprep.subr.bf16.mxu0 0
      %403 = vmatpush1.bf16.msra.mxu0 %v393
      %404 = vmatprep.subr.bf16.mxu0 0
      %405 = vmatpush1.bf16.msra.mxu0 %v392
      %406 = vmatprep.subr.bf16.mxu0 0
      %407 = vmatpush1.bf16.msra.mxu0 %v391
      %408 = vmatprep.subr.bf16.mxu0 0
      %409 = vmatpush1.bf16.msra.mxu0 %v390
      %410 = vmatprep.subr.bf16.mxu0 0
      %411 = vmatpush1.bf16.msra.mxu0 %v389
      %412 = vmatprep.subr.bf16.mxu0 0
      %413 = vmatpush1.bf16.msra.mxu0 %v388
      %414 = vmatprep.subr.bf16.mxu0 0
      %415 = vmatpush1.bf16.msra.mxu0 %v387
      %416 = vmatprep.subr.bf16.mxu0 0
      %417 = vmatpush1.bf16.msra.mxu0 %v386
      %418 = vmatprep.subr.bf16.mxu0 0
      %419 = vmatpush2.bf16.msra.mxu0 0
      %420 = vmatprep.subr.bf16.mxu0 0
      %421 = vmatpush2.bf16.msra.mxu0 0
      %422 = vmatprep.subr.bf16.mxu0 0
      %423 = vmatpush2.bf16.msra.mxu0 0
      %424 = vmatprep.subr.bf16.mxu0 0
      %425 = vmatpush2.bf16.msra.mxu0 0
      %426 = vmatprep.subr.bf16.mxu0 0
      %427 = vmatpush2.bf16.msra.mxu0 0
      %428 = vmatprep.subr.bf16.mxu0 0
      %429 = vmatpush2.bf16.msra.mxu0 0
      %430 = vmatprep.subr.bf16.mxu0 0
      %431 = vmatpush2.bf16.msra.mxu0 0
      %432 = vmatprep.subr.bf16.mxu0 0
      %433 = vmatpush2.bf16.msra.mxu0 0
      %434 = vmatprep.mubr.bf16.mxu0 0
      %435 = vmatmul.mubr.bf16.gmra.mxu0 %v315
      %v436 = vpop.f32.mrf.mxu0
      %v437 = vadd.f32 %v352, %v436
      %v438 = vpop.f32.mrf.mxu0
      %v439 = vpop.f32.mrf.mxu0
      %v440 = vadd.f32 %v352, %v439
      %v441 = vpop.f32.mrf.mxu0
      %442 = vmatprep.mubr.bf16.mxu0 0
      %443 = vmatmul.mubr.bf16.gmra.mxu0 %v316
      %v444 = vpop.f32.mrf.mxu0
      %v445 = vadd.f32 %v352, %v444
      %v446 = vpop.f32.mrf.mxu0
      %v447 = vpop.f32.mrf.mxu0
      %v448 = vadd.f32 %v352, %v447
      %v449 = vpop.f32.mrf.mxu0
      %450 = vmatprep.mubr.bf16.mxu0 0
      %451 = vmatmul.mubr.bf16.gmra.mxu0 %v317
      %v452 = vpop.f32.mrf.mxu0
      %v453 = vadd.f32 %v352, %v452
      %v454 = vpop.f32.mrf.mxu0
      %v455 = vpop.f32.mrf.mxu0
      %v456 = vadd.f32 %v352, %v455
      %v457 = vpop.f32.mrf.mxu0
      %458 = vmatprep.mubr.bf16.mxu0 0
      %459 = vmatmul.mubr.bf16.gmra.mxu0 %v318
      %v460 = vpop.f32.mrf.mxu0
      %v461 = vadd.f32 %v352, %v460
      %v462 = vpop.f32.mrf.mxu0
      %v463 = vpop.f32.mrf.mxu0
      %v464 = vadd.f32 %v352, %v463
      %v465 = vpop.f32.mrf.mxu0
      %466 = vmatprep.mubr.bf16.mxu0 0
      %467 = vmatmul.mubr.bf16.gmra.mxu0 %v319
      %v468 = vpop.f32.mrf.mxu0
      %v469 = vadd.f32 %v352, %v468
      %v470 = vpop.f32.mrf.mxu0
      %v471 = vpop.f32.mrf.mxu0
      %v472 = vadd.f32 %v352, %v471
      %v473 = vpop.f32.mrf.mxu0
      %474 = vmatprep.mubr.bf16.mxu0 0
      %475 = vmatmul.mubr.bf16.gmra.mxu0 %v320
      %v476 = vpop.f32.mrf.mxu0
      %v477 = vadd.f32 %v352, %v476
      %v478 = vpop.f32.mrf.mxu0
      %v479 = vpop.f32.mrf.mxu0
      %v480 = vadd.f32 %v352, %v479
      %v481 = vpop.f32.mrf.mxu0
      %482 = vmatprep.mubr.bf16.mxu0 0
      %483 = vmatmul.mubr.bf16.gmra.mxu0 %v321
      %v484 = vpop.f32.mrf.mxu0
      %v485 = vadd.f32 %v352, %v484
      %v486 = vpop.f32.mrf.mxu0
      %v487 = vpop.f32.mrf.mxu0
      %v488 = vadd.f32 %v352, %v487
      %v489 = vpop.f32.mrf.mxu0
      %490 = vmatprep.mubr.bf16.mxu0 0
      %491 = vmatmul.mubr.bf16.gmra.mxu0 %v322
      %v492 = vpop.f32.mrf.mxu0
      %v493 = vadd.f32 %v352, %v492
      %v494 = vpop.f32.mrf.mxu0
      %v495 = vpop.f32.mrf.mxu0
      %v496 = vadd.f32 %v352, %v495
      %v497 = vpop.f32.mrf.mxu0
      %498 = vmatprep.mubr.bf16.mxu0 0
      %499 = vmatmul.mubr.bf16.gmra.mxu0 %v323
      %v500 = vpop.f32.mrf.mxu0
      %v501 = vadd.f32 %v352, %v500
      %v502 = vpop.f32.mrf.mxu0
      %v503 = vpop.f32.mrf.mxu0
      %v504 = vadd.f32 %v352, %v503
      %v505 = vpop.f32.mrf.mxu0
      %506 = vmatprep.mubr.bf16.mxu0 0
      %507 = vmatmul.mubr.bf16.gmra.mxu0 %v324
      %v508 = vpop.f32.mrf.mxu0
      %v509 = vadd.f32 %v352, %v508
      %v510 = vpop.f32.mrf.mxu0
      %v511 = vpop.f32.mrf.mxu0
      %v512 = vadd.f32 %v352, %v511
      %v513 = vpop.f32.mrf.mxu0
      %514 = vmatprep.mubr.bf16.mxu0 0
      %515 = vmatmul.mubr.bf16.gmra.mxu0 %v325
      %v516 = vpop.f32.mrf.mxu0
      %v517 = vadd.f32 %v352, %v516
      %v518 = vpop.f32.mrf.mxu0
      %v519 = vpop.f32.mrf.mxu0
      %v520 = vadd.f32 %v352, %v519
      %v521 = vpop.f32.mrf.mxu0
      %522 = vmatprep.mubr.bf16.mxu0 0
      %523 = vmatmul.mubr.bf16.gmra.mxu0 %v326
      %v524 = vpop.f32.mrf.mxu0
      %v525 = vadd.f32 %v352, %v524
      %v526 = vpop.f32.mrf.mxu0
      %v527 = vpop.f32.mrf.mxu0
      %v528 = vadd.f32 %v352, %v527
      %v529 = vpop.f32.mrf.mxu0
      %530 = vmatprep.mubr.bf16.mxu0 0
      %531 = vmatmul.mubr.bf16.gmra.mxu0 %v327
      %v532 = vpop.f32.mrf.mxu0
      %v533 = vadd.f32 %v352, %v532
      %v534 = vpop.f32.mrf.mxu0
      %v535 = vpop.f32.mrf.mxu0
      %v536 = vadd.f32 %v352, %v535
      %v537 = vpop.f32.mrf.mxu0
      %538 = vmatprep.mubr.bf16.mxu0 0
      %539 = vmatmul.mubr.bf16.gmra.mxu0 %v328
      %v540 = vpop.f32.mrf.mxu0
      %v541 = vadd.f32 %v352, %v540
      %v542 = vpop.f32.mrf.mxu0
      %v543 = vpop.f32.mrf.mxu0
      %v544 = vadd.f32 %v352, %v543
      %v545 = vpop.f32.mrf.mxu0
      %546 = vmatprep.mubr.bf16.mxu0 0
      %547 = vmatmul.mubr.bf16.gmra.mxu0 %v329
      %v548 = vpop.f32.mrf.mxu0
      %v549 = vadd.f32 %v352, %v548
      %v550 = vpop.f32.mrf.mxu0
      %v551 = vpop.f32.mrf.mxu0
      %v552 = vadd.f32 %v352, %v551
      %v553 = vpop.f32.mrf.mxu0
      %554 = vmatprep.mubr.bf16.mxu0 0
      %555 = vmatmul.mubr.bf16.gmra.mxu0 %v330
      %v556 = vpop.f32.mrf.mxu0
      %v557 = vadd.f32 %v352, %v556
      %v558 = vpop.f32.mrf.mxu0
      %v559 = vpop.f32.mrf.mxu0
      %v560 = vadd.f32 %v352, %v559
      %v561 = vpop.f32.mrf.mxu0
      %562 = vdwg.mxu0
      %v563 = vmax.f32 %v437, 0.0
      %v564 = vmax.f32 %v440, 0.0
      %v565 = vmax.f32 %v445, 0.0
      %v566 = vmax.f32 %v448, 0.0
      %v567 = vmax.f32 %v453, 0.0
      %v568 = vmax.f32 %v456, 0.0
      %v569 = vmax.f32 %v461, 0.0
      %v570 = vmax.f32 %v464, 0.0
      %v571 = vmax.f32 %v469, 0.0
      %v572 = vmax.f32 %v472, 0.0
      %v573 = vmax.f32 %v477, 0.0
      %v574 = vmax.f32 %v480, 0.0
      %v575 = vmax.f32 %v485, 0.0
      %v576 = vmax.f32 %v488, 0.0
      %v577 = vmax.f32 %v493, 0.0
      %v578 = vmax.f32 %v496, 0.0
      %v579 = vmax.f32 %v501, 0.0
      %v580 = vmax.f32 %v504, 0.0
      %v581 = vmax.f32 %v509, 0.0
      %v582 = vmax.f32 %v512, 0.0
      %v583 = vmax.f32 %v517, 0.0
      %v584 = vmax.f32 %v520, 0.0
      %v585 = vmax.f32 %v525, 0.0
      %v586 = vmax.f32 %v528, 0.0
      %v587 = vmax.f32 %v533, 0.0
      %v588 = vmax.f32 %v536, 0.0
      %v589 = vmax.f32 %v541, 0.0
      %v590 = vmax.f32 %v544, 0.0
      %v591 = vmax.f32 %v549, 0.0
      %v592 = vmax.f32 %v552, 0.0
      %v593 = vmax.f32 %v557, 0.0
      %v594 = vmax.f32 %v560, 0.0
      %v595 = vpack.c.bf16 %v564, %v563
      %v596 = vpack.c.bf16 %v566, %v565
      %v597 = vpack.c.bf16 %v568, %v567
      %v598 = vpack.c.bf16 %v570, %v569
      %v599 = vpack.c.bf16 %v572, %v571
      %v600 = vpack.c.bf16 %v574, %v573
      %v601 = vpack.c.bf16 %v576, %v575
      %v602 = vpack.c.bf16 %v578, %v577
      %v603 = vpack.c.bf16 %v580, %v579
      %v604 = vpack.c.bf16 %v582, %v581
      %v605 = vpack.c.bf16 %v584, %v583
      %v606 = vpack.c.bf16 %v586, %v585
      %v607 = vpack.c.bf16 %v588, %v587
      %v608 = vpack.c.bf16 %v590, %v589
      %v609 = vpack.c.bf16 %v592, %v591
      %v610 = vpack.c.bf16 %v594, %v593
      %v611 = vld [vmem:[%s3] sm:$0xf]
      %v612 = vld [vmem:[%s3 + $0x4] sm:$0xf]
      %v613 = vld [vmem:[%s3 + $0x8] sm:$0xf]
      %v614 = vld [vmem:[%s3 + $0xc] sm:$0xf]
      %v615 = vld [vmem:[%s3 + $0x10] sm:$0xf]
      %v616 = vld [vmem:[%s3 + $0x14] sm:$0xf]
      %v617 = vld [vmem:[%s3 + $0x18] sm:$0xf]
      %v618 = vld [vmem:[%s3 + $0x1c] sm:$0xf]
      %v619 = vld [vmem:[%s3 + $0x20] sm:$0xf]
      %v620 = vld [vmem:[%s3 + $0x24] sm:$0xf]
      %v621 = vld [vmem:[%s3 + $0x28] sm:$0xf]
      %v622 = vld [vmem:[%s3 + $0x2c] sm:$0xf]
      %v623 = vld [vmem:[%s3 + $0x30] sm:$0xf]
      %v624 = vld [vmem:[%s3 + $0x34] sm:$0xf]
      %v625 = vld [vmem:[%s3 + $0x38] sm:$0xf]
      %v626 = vld [vmem:[%s3 + $0x3c] sm:$0xf]
      %v627 = vld [vmem:[%s4] sm:$0x1]
      %v629 = vlaneseq
      %v630 = vshrl.u32 %v629, 7
      %v631 = vsub.s32 0, %v630
      %v632 = vrot.slane %v627, %v631
      %v650 = vunpack.c.l.b16 %v611
      %v651 = vunpack.c.l.b16 %v612
      %v652 = vunpack.c.l.b16 %v613
      %v653 = vunpack.c.l.b16 %v614
      %v654 = vunpack.c.l.b16 %v615
      %v655 = vunpack.c.l.b16 %v616
      %v656 = vunpack.c.l.b16 %v617
      %v657 = vunpack.c.l.b16 %v618
      %v658 = vunpack.c.l.b16 %v619
      %v659 = vunpack.c.l.b16 %v620
      %v660 = vunpack.c.l.b16 %v621
      %v661 = vunpack.c.l.b16 %v622
      %v662 = vunpack.c.l.b16 %v623
      %v663 = vunpack.c.l.b16 %v624
      %v664 = vunpack.c.l.b16 %v625
      %v665 = vunpack.c.l.b16 %v626
      %v666 = vpack.c.b16 %v651, %v650
      %v667 = vpack.c.b16 %v653, %v652
      %v668 = vpack.c.b16 %v655, %v654
      %v669 = vpack.c.b16 %v657, %v656
      %v670 = vpack.c.b16 %v659, %v658
      %v671 = vpack.c.b16 %v661, %v660
      %v672 = vpack.c.b16 %v663, %v662
      %v673 = vpack.c.b16 %v665, %v664
      %682 = vmatprep.subr.bf16.mxu0 0
      %683 = vmatpush1.bf16.msra.mxu0 %v673
      %684 = vmatprep.subr.bf16.mxu0 0
      %685 = vmatpush1.bf16.msra.mxu0 %v672
      %686 = vmatprep.subr.bf16.mxu0 0
      %687 = vmatpush1.bf16.msra.mxu0 %v671
      %688 = vmatprep.subr.bf16.mxu0 0
      %689 = vmatpush1.bf16.msra.mxu0 %v670
      %690 = vmatprep.subr.bf16.mxu0 0
      %691 = vmatpush1.bf16.msra.mxu0 %v669
      %692 = vmatprep.subr.bf16.mxu0 0
      %693 = vmatpush1.bf16.msra.mxu0 %v668
      %694 = vmatprep.subr.bf16.mxu0 0
      %695 = vmatpush1.bf16.msra.mxu0 %v667
      %696 = vmatprep.subr.bf16.mxu0 0
      %697 = vmatpush1.bf16.msra.mxu0 %v666
      %698 = vmatprep.subr.bf16.mxu0 0
      %699 = vmatpush2.bf16.msra.mxu0 0
      %700 = vmatprep.subr.bf16.mxu0 0
      %701 = vmatpush2.bf16.msra.mxu0 0
      %702 = vmatprep.subr.bf16.mxu0 0
      %703 = vmatpush2.bf16.msra.mxu0 0
      %704 = vmatprep.subr.bf16.mxu0 0
      %705 = vmatpush2.bf16.msra.mxu0 0
      %706 = vmatprep.subr.bf16.mxu0 0
      %707 = vmatpush2.bf16.msra.mxu0 0
      %708 = vmatprep.subr.bf16.mxu0 0
      %709 = vmatpush2.bf16.msra.mxu0 0
      %710 = vmatprep.subr.bf16.mxu0 0
      %711 = vmatpush2.bf16.msra.mxu0 0
      %712 = vmatprep.subr.bf16.mxu0 0
      %713 = vmatpush2.bf16.msra.mxu0 0
      %714 = vmatprep.mubr.bf16.mxu0 0
      %715 = vmatmul.mubr.bf16.gmra.mxu0 %v595
      %v716 = vpop.f32.mrf.mxu0
      %v717 = vadd.f32 %v632, %v716
      %v718 = vpop.f32.mrf.mxu0
      %v719 = vpop.f32.mrf.mxu0
      %v720 = vadd.f32 %v632, %v719
      %v721 = vpop.f32.mrf.mxu0
      %722 = vmatprep.mubr.bf16.mxu0 0
      %723 = vmatmul.mubr.bf16.gmra.mxu0 %v596
      %v724 = vpop.f32.mrf.mxu0
      %v725 = vadd.f32 %v632, %v724
      %v726 = vpop.f32.mrf.mxu0
      %v727 = vpop.f32.mrf.mxu0
      %v728 = vadd.f32 %v632, %v727
      %v729 = vpop.f32.mrf.mxu0
      %730 = vmatprep.mubr.bf16.mxu0 0
      %731 = vmatmul.mubr.bf16.gmra.mxu0 %v597
      %v732 = vpop.f32.mrf.mxu0
      %v733 = vadd.f32 %v632, %v732
      %v734 = vpop.f32.mrf.mxu0
      %v735 = vpop.f32.mrf.mxu0
      %v736 = vadd.f32 %v632, %v735
      %v737 = vpop.f32.mrf.mxu0
      %738 = vmatprep.mubr.bf16.mxu0 0
      %739 = vmatmul.mubr.bf16.gmra.mxu0 %v598
      %v740 = vpop.f32.mrf.mxu0
      %v741 = vadd.f32 %v632, %v740
      %v742 = vpop.f32.mrf.mxu0
      %v743 = vpop.f32.mrf.mxu0
      %v744 = vadd.f32 %v632, %v743
      %v745 = vpop.f32.mrf.mxu0
      %746 = vmatprep.mubr.bf16.mxu0 0
      %747 = vmatmul.mubr.bf16.gmra.mxu0 %v599
      %v748 = vpop.f32.mrf.mxu0
      %v749 = vadd.f32 %v632, %v748
      %v750 = vpop.f32.mrf.mxu0
      %v751 = vpop.f32.mrf.mxu0
      %v752 = vadd.f32 %v632, %v751
      %v753 = vpop.f32.mrf.mxu0
      %754 = vmatprep.mubr.bf16.mxu0 0
      %755 = vmatmul.mubr.bf16.gmra.mxu0 %v600
      %v756 = vpop.f32.mrf.mxu0
      %v757 = vadd.f32 %v632, %v756
      %v758 = vpop.f32.mrf.mxu0
      %v759 = vpop.f32.mrf.mxu0
      %v760 = vadd.f32 %v632, %v759
      %v761 = vpop.f32.mrf.mxu0
      %762 = vmatprep.mubr.bf16.mxu0 0
      %763 = vmatmul.mubr.bf16.gmra.mxu0 %v601
      %v764 = vpop.f32.mrf.mxu0
      %v765 = vadd.f32 %v632, %v764
      %v766 = vpop.f32.mrf.mxu0
      %v767 = vpop.f32.mrf.mxu0
      %v768 = vadd.f32 %v632, %v767
      %v769 = vpop.f32.mrf.mxu0
      %770 = vmatprep.mubr.bf16.mxu0 0
      %771 = vmatmul.mubr.bf16.gmra.mxu0 %v602
      %v772 = vpop.f32.mrf.mxu0
      %v773 = vadd.f32 %v632, %v772
      %v774 = vpop.f32.mrf.mxu0
      %v775 = vpop.f32.mrf.mxu0
      %v776 = vadd.f32 %v632, %v775
      %v777 = vpop.f32.mrf.mxu0
      %778 = vmatprep.mubr.bf16.mxu0 0
      %779 = vmatmul.mubr.bf16.gmra.mxu0 %v603
      %v780 = vpop.f32.mrf.mxu0
      %v781 = vadd.f32 %v632, %v780
      %v782 = vpop.f32.mrf.mxu0
      %v783 = vpop.f32.mrf.mxu0
      %v784 = vadd.f32 %v632, %v783
      %v785 = vpop.f32.mrf.mxu0
      %786 = vmatprep.mubr.bf16.mxu0 0
      %787 = vmatmul.mubr.bf16.gmra.mxu0 %v604
      %v788 = vpop.f32.mrf.mxu0
      %v789 = vadd.f32 %v632, %v788
      %v790 = vpop.f32.mrf.mxu0
      %v791 = vpop.f32.mrf.mxu0
      %v792 = vadd.f32 %v632, %v791
      %v793 = vpop.f32.mrf.mxu0
      %794 = vmatprep.mubr.bf16.mxu0 0
      %795 = vmatmul.mubr.bf16.gmra.mxu0 %v605
      %v796 = vpop.f32.mrf.mxu0
      %v797 = vadd.f32 %v632, %v796
      %v798 = vpop.f32.mrf.mxu0
      %v799 = vpop.f32.mrf.mxu0
      %v800 = vadd.f32 %v632, %v799
      %v801 = vpop.f32.mrf.mxu0
      %802 = vmatprep.mubr.bf16.mxu0 0
      %803 = vmatmul.mubr.bf16.gmra.mxu0 %v606
      %v804 = vpop.f32.mrf.mxu0
      %v805 = vadd.f32 %v632, %v804
      %v806 = vpop.f32.mrf.mxu0
      %v807 = vpop.f32.mrf.mxu0
      %v808 = vadd.f32 %v632, %v807
      %v809 = vpop.f32.mrf.mxu0
      %810 = vmatprep.mubr.bf16.mxu0 0
      %811 = vmatmul.mubr.bf16.gmra.mxu0 %v607
      %v812 = vpop.f32.mrf.mxu0
      %v813 = vadd.f32 %v632, %v812
      %v814 = vpop.f32.mrf.mxu0
      %v815 = vpop.f32.mrf.mxu0
      %v816 = vadd.f32 %v632, %v815
      %v817 = vpop.f32.mrf.mxu0
      %818 = vmatprep.mubr.bf16.mxu0 0
      %819 = vmatmul.mubr.bf16.gmra.mxu0 %v608
      %v820 = vpop.f32.mrf.mxu0
      %v821 = vadd.f32 %v632, %v820
      %v822 = vpop.f32.mrf.mxu0
      %v823 = vpop.f32.mrf.mxu0
      %v824 = vadd.f32 %v632, %v823
      %v825 = vpop.f32.mrf.mxu0
      %826 = vmatprep.mubr.bf16.mxu0 0
      %827 = vmatmul.mubr.bf16.gmra.mxu0 %v609
      %v828 = vpop.f32.mrf.mxu0
      %v829 = vadd.f32 %v632, %v828
      %v830 = vpop.f32.mrf.mxu0
      %v831 = vpop.f32.mrf.mxu0
      %v832 = vadd.f32 %v632, %v831
      %v833 = vpop.f32.mrf.mxu0
      %834 = vmatprep.mubr.bf16.mxu0 0
      %835 = vmatmul.mubr.bf16.gmra.mxu0 %v610
      %v836 = vpop.f32.mrf.mxu0
      %v837 = vadd.f32 %v632, %v836
      %v838 = vpop.f32.mrf.mxu0
      %v839 = vpop.f32.mrf.mxu0
      %v840 = vadd.f32 %v632, %v839
      %v841 = vpop.f32.mrf.mxu0
      %842 = vdwg.mxu0
      %v843 = vmax.f32 %v717, 0.0
      %v844 = vmax.f32 %v720, 0.0
      %v845 = vmax.f32 %v725, 0.0
      %v846 = vmax.f32 %v728, 0.0
      %v847 = vmax.f32 %v733, 0.0
      %v848 = vmax.f32 %v736, 0.0
      %v849 = vmax.f32 %v741, 0.0
      %v850 = vmax.f32 %v744, 0.0
      %v851 = vmax.f32 %v749, 0.0
      %v852 = vmax.f32 %v752, 0.0
      %v853 = vmax.f32 %v757, 0.0
      %v854 = vmax.f32 %v760, 0.0
      %v855 = vmax.f32 %v765, 0.0
      %v856 = vmax.f32 %v768, 0.0
      %v857 = vmax.f32 %v773, 0.0
      %v858 = vmax.f32 %v776, 0.0
      %v859 = vmax.f32 %v781, 0.0
      %v860 = vmax.f32 %v784, 0.0
      %v861 = vmax.f32 %v789, 0.0
      %v862 = vmax.f32 %v792, 0.0
      %v863 = vmax.f32 %v797, 0.0
      %v864 = vmax.f32 %v800, 0.0
      %v865 = vmax.f32 %v805, 0.0
      %v866 = vmax.f32 %v808, 0.0
      %v867 = vmax.f32 %v813, 0.0
      %v868 = vmax.f32 %v816, 0.0
      %v869 = vmax.f32 %v821, 0.0
      %v870 = vmax.f32 %v824, 0.0
      %v871 = vmax.f32 %v829, 0.0
      %v872 = vmax.f32 %v832, 0.0
      %v873 = vmax.f32 %v837, 0.0
      %v874 = vmax.f32 %v840, 0.0
      %v875 = vpack.c.bf16 %v844, %v843
      %v876 = vpack.c.bf16 %v846, %v845
      %v877 = vpack.c.bf16 %v848, %v847
      %v878 = vpack.c.bf16 %v850, %v849
      %v879 = vpack.c.bf16 %v852, %v851
      %v880 = vpack.c.bf16 %v854, %v853
      %v881 = vpack.c.bf16 %v856, %v855
      %v882 = vpack.c.bf16 %v858, %v857
      %v883 = vpack.c.bf16 %v860, %v859
      %v884 = vpack.c.bf16 %v862, %v861
      %v885 = vpack.c.bf16 %v864, %v863
      %v886 = vpack.c.bf16 %v866, %v865
      %v887 = vpack.c.bf16 %v868, %v867
      %v888 = vpack.c.bf16 %v870, %v869
      %v889 = vpack.c.bf16 %v872, %v871
      %v890 = vpack.c.bf16 %v874, %v873
      %v891 = vld [vmem:[%s5] sm:$0xff]
      %v892 = vld [vmem:[%s5 + $0x8] sm:$0xff]
      %v893 = vld [vmem:[%s5 + $0x10] sm:$0xff]
      %v894 = vld [vmem:[%s5 + $0x18] sm:$0xff]
      %v895 = vld [vmem:[%s5 + $0x20] sm:$0xff]
      %v896 = vld [vmem:[%s5 + $0x28] sm:$0xff]
      %v897 = vld [vmem:[%s5 + $0x30] sm:$0xff]
      %v898 = vld [vmem:[%s5 + $0x38] sm:$0xff]
      %v899 = vld [vmem:[%s5 + $0x40] sm:$0xff]
      %v900 = vld [vmem:[%s5 + $0x48] sm:$0xff]
      %v901 = vld [vmem:[%s5 + $0x50] sm:$0xff]
      %v902 = vld [vmem:[%s5 + $0x58] sm:$0xff]
      %v903 = vld [vmem:[%s5 + $0x60] sm:$0xff]
      %v904 = vld [vmem:[%s5 + $0x68] sm:$0xff]
      %v905 = vld [vmem:[%s5 + $0x70] sm:$0xff]
      %v906 = vld [vmem:[%s5 + $0x78] sm:$0xff]
      %v907 = vld [vmem:[%s5 + $0x80] sm:$0xff]
      %v908 = vld [vmem:[%s5 + $0x88] sm:$0xff]
      %v909 = vld [vmem:[%s5 + $0x90] sm:$0xff]
      %v910 = vld [vmem:[%s5 + $0x98] sm:$0xff]
      %v911 = vld [vmem:[%s5 + $0xa0] sm:$0xff]
      %v912 = vld [vmem:[%s5 + $0xa8] sm:$0xff]
      %v913 = vld [vmem:[%s5 + $0xb0] sm:$0xff]
      %v914 = vld [vmem:[%s5 + $0xb8] sm:$0xff]
      %v915 = vld [vmem:[%s5 + $0xc0] sm:$0xff]
      %v916 = vld [vmem:[%s5 + $0xc8] sm:$0xff]
      %v917 = vld [vmem:[%s5 + $0xd0] sm:$0xff]
      %v918 = vld [vmem:[%s5 + $0xd8] sm:$0xff]
      %v919 = vld [vmem:[%s5 + $0xe0] sm:$0xff]
      %v920 = vld [vmem:[%s5 + $0xe8] sm:$0xff]
      %v921 = vld [vmem:[%s5 + $0xf0] sm:$0xff]
      %v922 = vld [vmem:[%s5 + $0xf8] sm:$0xff]
      %v923 = vld [vmem:[%s6] sm:$0xf]
      %v925 = vlaneseq
      %v926 = vshrl.u32 %v925, 7
      %v927 = vsub.s32 0, %v926
      %v928 = vrot.slane %v923, %v927
      %v929 = vlaneseq
      %v930 = vshrl.u32 %v929, 7
      %v931 = vsub.s32 1, %v930
      %v932 = vrot.slane %v923, %v931
      %v933 = vlaneseq
      %v934 = vshrl.u32 %v933, 7
      %v935 = vsub.s32 2, %v934
      %v936 = vrot.slane %v923, %v935
      %v937 = vlaneseq
      %v938 = vshrl.u32 %v937, 7
      %v939 = vsub.s32 3, %v938
      %v940 = vrot.slane %v923, %v939
      %v977 = vunpack.c.l.b16 %v891
      %v978 = vunpack.c.h.b16 %v891
      %v979 = vunpack.c.l.b16 %v892
      %v980 = vunpack.c.h.b16 %v892
      %v981 = vunpack.c.l.b16 %v893
      %v982 = vunpack.c.h.b16 %v893
      %v983 = vunpack.c.l.b16 %v894
      %v984 = vunpack.c.h.b16 %v894
      %v985 = vunpack.c.l.b16 %v895
      %v986 = vunpack.c.h.b16 %v895
      %v987 = vunpack.c.l.b16 %v896
      %v988 = vunpack.c.h.b16 %v896
      %v989 = vunpack.c.l.b16 %v897
      %v990 = vunpack.c.h.b16 %v897
      %v991 = vunpack.c.l.b16 %v898
      %v992 = vunpack.c.h.b16 %v898
      %v993 = vunpack.c.l.b16 %v899
      %v994 = vunpack.c.h.b16 %v899
      %v995 = vunpack.c.l.b16 %v900
      %v996 = vunpack.c.h.b16 %v900
      %v997 = vunpack.c.l.b16 %v901
      %v998 = vunpack.c.h.b16 %v901
      %v999 = vunpack.c.l.b16 %v902
      %v1000 = vunpack.c.h.b16 %v902
      %v1001 = vunpack.c.l.b16 %v903
      %v1002 = vunpack.c.h.b16 %v903
      %v1003 = vunpack.c.l.b16 %v904
      %v1004 = vunpack.c.h.b16 %v904
      %v1005 = vunpack.c.l.b16 %v905
      %v1006 = vunpack.c.h.b16 %v905
      %v1007 = vunpack.c.l.b16 %v906
      %v1008 = vunpack.c.h.b16 %v906
      %v1009 = vunpack.c.l.b16 %v907
      %v1010 = vunpack.c.h.b16 %v907
      %v1011 = vunpack.c.l.b16 %v908
      %v1012 = vunpack.c.h.b16 %v908
      %v1013 = vunpack.c.l.b16 %v909
      %v1014 = vunpack.c.h.b16 %v909
      %v1015 = vunpack.c.l.b16 %v910
      %v1016 = vunpack.c.h.b16 %v910
      %v1017 = vunpack.c.l.b16 %v911
      %v1018 = vunpack.c.h.b16 %v911
      %v1019 = vunpack.c.l.b16 %v912
      %v1020 = vunpack.c.h.b16 %v912
      %v1021 = vunpack.c.l.b16 %v913
      %v1022 = vunpack.c.h.b16 %v913
      %v1023 = vunpack.c.l.b16 %v914
      %v1024 = vunpack.c.h.b16 %v914
      %v1025 = vunpack.c.l.b16 %v915
      %v1026 = vunpack.c.h.b16 %v915
      %v1027 = vunpack.c.l.b16 %v916
      %v1028 = vunpack.c.h.b16 %v916
      %v1029 = vunpack.c.l.b16 %v917
      %v1030 = vunpack.c.h.b16 %v917
      %v1031 = vunpack.c.l.b16 %v918
      %v1032 = vunpack.c.h.b16 %v918
      %v1033 = vunpack.c.l.b16 %v919
      %v1034 = vunpack.c.h.b16 %v919
      %v1035 = vunpack.c.l.b16 %v920
      %v1036 = vunpack.c.h.b16 %v920
      %v1037 = vunpack.c.l.b16 %v921
      %v1038 = vunpack.c.h.b16 %v921
      %v1039 = vunpack.c.l.b16 %v922
      %v1040 = vunpack.c.h.b16 %v922
      %v1041 = vpack.c.b16 %v981, %v977
      %v1042 = vpack.c.b16 %v982, %v978
      %v1043 = vpack.c.b16 %v983, %v979
      %v1044 = vpack.c.b16 %v984, %v980
      %v1045 = vpack.c.b16 %v989, %v985
      %v1046 = vpack.c.b16 %v990, %v986
      %v1047 = vpack.c.b16 %v991, %v987
      %v1048 = vpack.c.b16 %v992, %v988
      %v1049 = vpack.c.b16 %v997, %v993
      %v1050 = vpack.c.b16 %v998, %v994
      %v1051 = vpack.c.b16 %v999, %v995
      %v1052 = vpack.c.b16 %v1000, %v996
      %v1053 = vpack.c.b16 %v1005, %v1001
      %v1054 = vpack.c.b16 %v1006, %v1002
      %v1055 = vpack.c.b16 %v1007, %v1003
      %v1056 = vpack.c.b16 %v1008, %v1004
      %v1057 = vpack.c.b16 %v1013, %v1009
      %v1058 = vpack.c.b16 %v1014, %v1010
      %v1059 = vpack.c.b16 %v1015, %v1011
      %v1060 = vpack.c.b16 %v1016, %v1012
      %v1061 = vpack.c.b16 %v1021, %v1017
      %v1062 = vpack.c.b16 %v1022, %v1018
      %v1063 = vpack.c.b16 %v1023, %v1019
      %v1064 = vpack.c.b16 %v1024, %v1020
      %v1065 = vpack.c.b16 %v1029, %v1025
      %v1066 = vpack.c.b16 %v1030, %v1026
      %v1067 = vpack.c.b16 %v1031, %v1027
      %v1068 = vpack.c.b16 %v1032, %v1028
      %v1069 = vpack.c.b16 %v1037, %v1033
      %v1070 = vpack.c.b16 %v1038, %v1034
      %v1071 = vpack.c.b16 %v1039, %v1035
      %v1072 = vpack.c.b16 %v1040, %v1036
      %1105 = vmatprep.subr.bf16.mxu0 %v1070
      %1106 = vmatpush1.bf16.msra.mxu0 %v1069
      %1107 = vmatprep.subr.bf16.mxu0 %v1066
      %1108 = vmatpush1.bf16.msra.mxu0 %v1065
      %1109 = vmatprep.subr.bf16.mxu0 %v1062
      %1110 = vmatpush1.bf16.msra.mxu0 %v1061
      %1111 = vmatprep.subr.bf16.mxu0 %v1058
      %1112 = vmatpush1.bf16.msra.mxu0 %v1057
      %1113 = vmatprep.subr.bf16.mxu0 %v1054
      %1114 = vmatpush1.bf16.msra.mxu0 %v1053
      %1115 = vmatprep.subr.bf16.mxu0 %v1050
      %1116 = vmatpush1.bf16.msra.mxu0 %v1049
      %1117 = vmatprep.subr.bf16.mxu0 %v1046
      %1118 = vmatpush1.bf16.msra.mxu0 %v1045
      %1119 = vmatprep.subr.bf16.mxu0 %v1042
      %1120 = vmatpush1.bf16.msra.mxu0 %v1041
      %1121 = vmatprep.subr.bf16.mxu0 0
      %1122 = vmatpush2.bf16.msra.mxu0 0
      %1123 = vmatprep.subr.bf16.mxu0 0
      %1124 = vmatpush2.bf16.msra.mxu0 0
      %1125 = vmatprep.subr.bf16.mxu0 0
      %1126 = vmatpush2.bf16.msra.mxu0 0
      %1127 = vmatprep.subr.bf16.mxu0 0
      %1128 = vmatpush2.bf16.msra.mxu0 0
      %1129 = vmatprep.subr.bf16.mxu0 0
      %1130 = vmatpush2.bf16.msra.mxu0 0
      %1131 = vmatprep.subr.bf16.mxu0 0
      %1132 = vmatpush2.bf16.msra.mxu0 0
      %1133 = vmatprep.subr.bf16.mxu0 0
      %1134 = vmatpush2.bf16.msra.mxu0 0
      %1135 = vmatprep.subr.bf16.mxu0 0
      %1136 = vmatpush2.bf16.msra.mxu0 0
      %1137 = vmatprep.mubr.bf16.mxu0 0
      %1138 = vmatmul.mubr.bf16.gmra.mxu0 %v875
      %v1139 = vpop.f32.mrf.mxu0
      %v1140 = vadd.f32 %v928, %v1139
      %v1141 = vpop.f32.mrf.mxu0
      %v1142 = vadd.f32 %v932, %v1141
      %v1143 = vpop.f32.mrf.mxu0
      %v1144 = vadd.f32 %v928, %v1143
      %v1145 = vpop.f32.mrf.mxu0
      %v1146 = vadd.f32 %v932, %v1145
      %1147 = vmatprep.mubr.bf16.mxu0 0
      %1148 = vmatmul.mubr.bf16.gmra.mxu0 %v876
      %v1149 = vpop.f32.mrf.mxu0
      %v1150 = vadd.f32 %v928, %v1149
      %v1151 = vpop.f32.mrf.mxu0
      %v1152 = vadd.f32 %v932, %v1151
      %v1153 = vpop.f32.mrf.mxu0
      %v1154 = vadd.f32 %v928, %v1153
      %v1155 = vpop.f32.mrf.mxu0
      %v1156 = vadd.f32 %v932, %v1155
      %1157 = vmatprep.mubr.bf16.mxu0 0
      %1158 = vmatmul.mubr.bf16.gmra.mxu0 %v877
      %v1159 = vpop.f32.mrf.mxu0
      %v1160 = vadd.f32 %v928, %v1159
      %v1161 = vpop.f32.mrf.mxu0
      %v1162 = vadd.f32 %v932, %v1161
      %v1163 = vpop.f32.mrf.mxu0
      %v1164 = vadd.f32 %v928, %v1163
      %v1165 = vpop.f32.mrf.mxu0
      %v1166 = vadd.f32 %v932, %v1165
      %1167 = vmatprep.mubr.bf16.mxu0 0
      %1168 = vmatmul.mubr.bf16.gmra.mxu0 %v878
      %v1169 = vpop.f32.mrf.mxu0
      %v1170 = vadd.f32 %v928, %v1169
      %v1171 = vpop.f32.mrf.mxu0
      %v1172 = vadd.f32 %v932, %v1171
      %v1173 = vpop.f32.mrf.mxu0
      %v1174 = vadd.f32 %v928, %v1173
      %v1175 = vpop.f32.mrf.mxu0
      %v1176 = vadd.f32 %v932, %v1175
      %1177 = vmatprep.mubr.bf16.mxu0 0
      %1178 = vmatmul.mubr.bf16.gmra.mxu0 %v879
      %v1179 = vpop.f32.mrf.mxu0
      %v1180 = vadd.f32 %v928, %v1179
      %v1181 = vpop.f32.mrf.mxu0
      %v1182 = vadd.f32 %v932, %v1181
      %v1183 = vpop.f32.mrf.mxu0
      %v1184 = vadd.f32 %v928, %v1183
      %v1185 = vpop.f32.mrf.mxu0
      %v1186 = vadd.f32 %v932, %v1185
      %1187 = vmatprep.mubr.bf16.mxu0 0
      %1188 = vmatmul.mubr.bf16.gmra.mxu0 %v880
      %v1189 = vpop.f32.mrf.mxu0
      %v1190 = vadd.f32 %v928, %v1189
      %v1191 = vpop.f32.mrf.mxu0
      %v1192 = vadd.f32 %v932, %v1191
      %v1193 = vpop.f32.mrf.mxu0
      %v1194 = vadd.f32 %v928, %v1193
      %v1195 = vpop.f32.mrf.mxu0
      %v1196 = vadd.f32 %v932, %v1195
      %1197 = vmatprep.mubr.bf16.mxu0 0
      %1198 = vmatmul.mubr.bf16.gmra.mxu0 %v881
      %v1199 = vpop.f32.mrf.mxu0
      %v1200 = vadd.f32 %v928, %v1199
      %v1201 = vpop.f32.mrf.mxu0
      %v1202 = vadd.f32 %v932, %v1201
      %v1203 = vpop.f32.mrf.mxu0
      %v1204 = vadd.f32 %v928, %v1203
      %v1205 = vpop.f32.mrf.mxu0
      %v1206 = vadd.f32 %v932, %v1205
      %1207 = vmatprep.mubr.bf16.mxu0 0
      %1208 = vmatmul.mubr.bf16.gmra.mxu0 %v882
      %v1209 = vpop.f32.mrf.mxu0
      %v1210 = vadd.f32 %v928, %v1209
      %v1211 = vpop.f32.mrf.mxu0
      %v1212 = vadd.f32 %v932, %v1211
      %v1213 = vpop.f32.mrf.mxu0
      %v1214 = vadd.f32 %v928, %v1213
      %v1215 = vpop.f32.mrf.mxu0
      %v1216 = vadd.f32 %v932, %v1215
      %1217 = vmatprep.mubr.bf16.mxu0 0
      %1218 = vmatmul.mubr.bf16.gmra.mxu0 %v883
      %v1219 = vpop.f32.mrf.mxu0
      %v1220 = vadd.f32 %v928, %v1219
      %v1221 = vpop.f32.mrf.mxu0
      %v1222 = vadd.f32 %v932, %v1221
      %v1223 = vpop.f32.mrf.mxu0
      %v1224 = vadd.f32 %v928, %v1223
      %v1225 = vpop.f32.mrf.mxu0
      %v1226 = vadd.f32 %v932, %v1225
      %1227 = vmatprep.mubr.bf16.mxu0 0
      %1228 = vmatmul.mubr.bf16.gmra.mxu0 %v884
      %v1229 = vpop.f32.mrf.mxu0
      %v1230 = vadd.f32 %v928, %v1229
      %v1231 = vpop.f32.mrf.mxu0
      %v1232 = vadd.f32 %v932, %v1231
      %v1233 = vpop.f32.mrf.mxu0
      %v1234 = vadd.f32 %v928, %v1233
      %v1235 = vpop.f32.mrf.mxu0
      %v1236 = vadd.f32 %v932, %v1235
      %1237 = vmatprep.mubr.bf16.mxu0 0
      %1238 = vmatmul.mubr.bf16.gmra.mxu0 %v885
      %v1239 = vpop.f32.mrf.mxu0
      %v1240 = vadd.f32 %v928, %v1239
      %v1241 = vpop.f32.mrf.mxu0
      %v1242 = vadd.f32 %v932, %v1241
      %v1243 = vpop.f32.mrf.mxu0
      %v1244 = vadd.f32 %v928, %v1243
      %v1245 = vpop.f32.mrf.mxu0
      %v1246 = vadd.f32 %v932, %v1245
      %1247 = vmatprep.mubr.bf16.mxu0 0
      %1248 = vmatmul.mubr.bf16.gmra.mxu0 %v886
      %v1249 = vpop.f32.mrf.mxu0
      %v1250 = vadd.f32 %v928, %v1249
      %v1251 = vpop.f32.mrf.mxu0
      %v1252 = vadd.f32 %v932, %v1251
      %v1253 = vpop.f32.mrf.mxu0
      %v1254 = vadd.f32 %v928, %v1253
      %v1255 = vpop.f32.mrf.mxu0
      %v1256 = vadd.f32 %v932, %v1255
      %1257 = vmatprep.mubr.bf16.mxu0 0
      %1258 = vmatmul.mubr.bf16.gmra.mxu0 %v887
      %v1259 = vpop.f32.mrf.mxu0
      %v1260 = vadd.f32 %v928, %v1259
      %v1261 = vpop.f32.mrf.mxu0
      %v1262 = vadd.f32 %v932, %v1261
      %v1263 = vpop.f32.mrf.mxu0
      %v1264 = vadd.f32 %v928, %v1263
      %v1265 = vpop.f32.mrf.mxu0
      %v1266 = vadd.f32 %v932, %v1265
      %1267 = vmatprep.mubr.bf16.mxu0 0
      %1268 = vmatmul.mubr.bf16.gmra.mxu0 %v888
      %v1269 = vpop.f32.mrf.mxu0
      %v1270 = vadd.f32 %v928, %v1269
      %v1271 = vpop.f32.mrf.mxu0
      %v1272 = vadd.f32 %v932, %v1271
      %v1273 = vpop.f32.mrf.mxu0
      %v1274 = vadd.f32 %v928, %v1273
      %v1275 = vpop.f32.mrf.mxu0
      %v1276 = vadd.f32 %v932, %v1275
      %1277 = vmatprep.mubr.bf16.mxu0 0
      %1278 = vmatmul.mubr.bf16.gmra.mxu0 %v889
      %v1279 = vpop.f32.mrf.mxu0
      %v1280 = vadd.f32 %v928, %v1279
      %v1281 = vpop.f32.mrf.mxu0
      %v1282 = vadd.f32 %v932, %v1281
      %v1283 = vpop.f32.mrf.mxu0
      %v1284 = vadd.f32 %v928, %v1283
      %v1285 = vpop.f32.mrf.mxu0
      %v1286 = vadd.f32 %v932, %v1285
      %1287 = vmatprep.mubr.bf16.mxu0 0
      %1288 = vmatmul.mubr.bf16.gmra.mxu0 %v890
      %v1289 = vpop.f32.mrf.mxu0
      %v1290 = vadd.f32 %v928, %v1289
      %v1291 = vpop.f32.mrf.mxu0
      %v1292 = vadd.f32 %v932, %v1291
      %v1293 = vpop.f32.mrf.mxu0
      %v1294 = vadd.f32 %v928, %v1293
      %v1295 = vpop.f32.mrf.mxu0
      %v1296 = vadd.f32 %v932, %v1295
      %1297 = vdwg.mxu0
      %1298 = vmatprep.subr.bf16.mxu0 %v1072
      %1299 = vmatpush1.bf16.msra.mxu0 %v1071
      %1300 = vmatprep.subr.bf16.mxu0 %v1068
      %1301 = vmatpush1.bf16.msra.mxu0 %v1067
      %1302 = vmatprep.subr.bf16.mxu0 %v1064
      %1303 = vmatpush1.bf16.msra.mxu0 %v1063
      %1304 = vmatprep.subr.bf16.mxu0 %v1060
      %1305 = vmatpush1.bf16.msra.mxu0 %v1059
      %1306 = vmatprep.subr.bf16.mxu0 %v1056
      %1307 = vmatpush1.bf16.msra.mxu0 %v1055
      %1308 = vmatprep.subr.bf16.mxu0 %v1052
      %1309 = vmatpush1.bf16.msra.mxu0 %v1051
      %1310 = vmatprep.subr.bf16.mxu0 %v1048
      %1311 = vmatpush1.bf16.msra.mxu0 %v1047
      %1312 = vmatprep.subr.bf16.mxu0 %v1044
      %1313 = vmatpush1.bf16.msra.mxu0 %v1043
      %1314 = vmatprep.subr.bf16.mxu0 0
      %1315 = vmatpush2.bf16.msra.mxu0 0
      %1316 = vmatprep.subr.bf16.mxu0 0
      %1317 = vmatpush2.bf16.msra.mxu0 0
      %1318 = vmatprep.subr.bf16.mxu0 0
      %1319 = vmatpush2.bf16.msra.mxu0 0
      %1320 = vmatprep.subr.bf16.mxu0 0
      %1321 = vmatpush2.bf16.msra.mxu0 0
      %1322 = vmatprep.subr.bf16.mxu0 0
      %1323 = vmatpush2.bf16.msra.mxu0 0
      %1324 = vmatprep.subr.bf16.mxu0 0
      %1325 = vmatpush2.bf16.msra.mxu0 0
      %1326 = vmatprep.subr.bf16.mxu0 0
      %1327 = vmatpush2.bf16.msra.mxu0 0
      %1328 = vmatprep.subr.bf16.mxu0 0
      %1329 = vmatpush2.bf16.msra.mxu0 0
      %1330 = vmatprep.mubr.bf16.mxu0 0
      %1331 = vmatmul.mubr.bf16.gmra.mxu0 %v875
      %v1332 = vpop.f32.mrf.mxu0
      %v1333 = vadd.f32 %v936, %v1332
      %v1334 = vpop.f32.mrf.mxu0
      %v1335 = vadd.f32 %v940, %v1334
      %v1336 = vpop.f32.mrf.mxu0
      %v1337 = vadd.f32 %v936, %v1336
      %v1338 = vpop.f32.mrf.mxu0
      %v1339 = vadd.f32 %v940, %v1338
      %1340 = vmatprep.mubr.bf16.mxu0 0
      %1341 = vmatmul.mubr.bf16.gmra.mxu0 %v876
      %v1342 = vpop.f32.mrf.mxu0
      %v1343 = vadd.f32 %v936, %v1342
      %v1344 = vpop.f32.mrf.mxu0
      %v1345 = vadd.f32 %v940, %v1344
      %v1346 = vpop.f32.mrf.mxu0
      %v1347 = vadd.f32 %v936, %v1346
      %v1348 = vpop.f32.mrf.mxu0
      %v1349 = vadd.f32 %v940, %v1348
      %1350 = vmatprep.mubr.bf16.mxu0 0
      %1351 = vmatmul.mubr.bf16.gmra.mxu0 %v877
      %v1352 = vpop.f32.mrf.mxu0
      %v1353 = vadd.f32 %v936, %v1352
      %v1354 = vpop.f32.mrf.mxu0
      %v1355 = vadd.f32 %v940, %v1354
      %v1356 = vpop.f32.mrf.mxu0
      %v1357 = vadd.f32 %v936, %v1356
      %v1358 = vpop.f32.mrf.mxu0
      %v1359 = vadd.f32 %v940, %v1358
      %1360 = vmatprep.mubr.bf16.mxu0 0
      %1361 = vmatmul.mubr.bf16.gmra.mxu0 %v878
      %v1362 = vpop.f32.mrf.mxu0
      %v1363 = vadd.f32 %v936, %v1362
      %v1364 = vpop.f32.mrf.mxu0
      %v1365 = vadd.f32 %v940, %v1364
      %v1366 = vpop.f32.mrf.mxu0
      %v1367 = vadd.f32 %v936, %v1366
      %v1368 = vpop.f32.mrf.mxu0
      %v1369 = vadd.f32 %v940, %v1368
      %1370 = vmatprep.mubr.bf16.mxu0 0
      %1371 = vmatmul.mubr.bf16.gmra.mxu0 %v879
      %v1372 = vpop.f32.mrf.mxu0
      %v1373 = vadd.f32 %v936, %v1372
      %v1374 = vpop.f32.mrf.mxu0
      %v1375 = vadd.f32 %v940, %v1374
      %v1376 = vpop.f32.mrf.mxu0
      %v1377 = vadd.f32 %v936, %v1376
      %v1378 = vpop.f32.mrf.mxu0
      %v1379 = vadd.f32 %v940, %v1378
      %1380 = vmatprep.mubr.bf16.mxu0 0
      %1381 = vmatmul.mubr.bf16.gmra.mxu0 %v880
      %v1382 = vpop.f32.mrf.mxu0
      %v1383 = vadd.f32 %v936, %v1382
      %v1384 = vpop.f32.mrf.mxu0
      %v1385 = vadd.f32 %v940, %v1384
      %v1386 = vpop.f32.mrf.mxu0
      %v1387 = vadd.f32 %v936, %v1386
      %v1388 = vpop.f32.mrf.mxu0
      %v1389 = vadd.f32 %v940, %v1388
      %1390 = vmatprep.mubr.bf16.mxu0 0
      %1391 = vmatmul.mubr.bf16.gmra.mxu0 %v881
      %v1392 = vpop.f32.mrf.mxu0
      %v1393 = vadd.f32 %v936, %v1392
      %v1394 = vpop.f32.mrf.mxu0
      %v1395 = vadd.f32 %v940, %v1394
      %v1396 = vpop.f32.mrf.mxu0
      %v1397 = vadd.f32 %v936, %v1396
      %v1398 = vpop.f32.mrf.mxu0
      %v1399 = vadd.f32 %v940, %v1398
      %1400 = vmatprep.mubr.bf16.mxu0 0
      %1401 = vmatmul.mubr.bf16.gmra.mxu0 %v882
      %v1402 = vpop.f32.mrf.mxu0
      %v1403 = vadd.f32 %v936, %v1402
      %v1404 = vpop.f32.mrf.mxu0
      %v1405 = vadd.f32 %v940, %v1404
      %v1406 = vpop.f32.mrf.mxu0
      %v1407 = vadd.f32 %v936, %v1406
      %v1408 = vpop.f32.mrf.mxu0
      %v1409 = vadd.f32 %v940, %v1408
      %1410 = vmatprep.mubr.bf16.mxu0 0
      %1411 = vmatmul.mubr.bf16.gmra.mxu0 %v883
      %v1412 = vpop.f32.mrf.mxu0
      %v1413 = vadd.f32 %v936, %v1412
      %v1414 = vpop.f32.mrf.mxu0
      %v1415 = vadd.f32 %v940, %v1414
      %v1416 = vpop.f32.mrf.mxu0
      %v1417 = vadd.f32 %v936, %v1416
      %v1418 = vpop.f32.mrf.mxu0
      %v1419 = vadd.f32 %v940, %v1418
      %1420 = vmatprep.mubr.bf16.mxu0 0
      %1421 = vmatmul.mubr.bf16.gmra.mxu0 %v884
      %v1422 = vpop.f32.mrf.mxu0
      %v1423 = vadd.f32 %v936, %v1422
      %v1424 = vpop.f32.mrf.mxu0
      %v1425 = vadd.f32 %v940, %v1424
      %v1426 = vpop.f32.mrf.mxu0
      %v1427 = vadd.f32 %v936, %v1426
      %v1428 = vpop.f32.mrf.mxu0
      %v1429 = vadd.f32 %v940, %v1428
      %1430 = vmatprep.mubr.bf16.mxu0 0
      %1431 = vmatmul.mubr.bf16.gmra.mxu0 %v885
      %v1432 = vpop.f32.mrf.mxu0
      %v1433 = vadd.f32 %v936, %v1432
      %v1434 = vpop.f32.mrf.mxu0
      %v1435 = vadd.f32 %v940, %v1434
      %v1436 = vpop.f32.mrf.mxu0
      %v1437 = vadd.f32 %v936, %v1436
      %v1438 = vpop.f32.mrf.mxu0
      %v1439 = vadd.f32 %v940, %v1438
      %1440 = vmatprep.mubr.bf16.mxu0 0
      %1441 = vmatmul.mubr.bf16.gmra.mxu0 %v886
      %v1442 = vpop.f32.mrf.mxu0
      %v1443 = vadd.f32 %v936, %v1442
      %v1444 = vpop.f32.mrf.mxu0
      %v1445 = vadd.f32 %v940, %v1444
      %v1446 = vpop.f32.mrf.mxu0
      %v1447 = vadd.f32 %v936, %v1446
      %v1448 = vpop.f32.mrf.mxu0
      %v1449 = vadd.f32 %v940, %v1448
      %1450 = vmatprep.mubr.bf16.mxu0 0
      %1451 = vmatmul.mubr.bf16.gmra.mxu0 %v887
      %v1452 = vpop.f32.mrf.mxu0
      %v1453 = vadd.f32 %v936, %v1452
      %v1454 = vpop.f32.mrf.mxu0
      %v1455 = vadd.f32 %v940, %v1454
      %v1456 = vpop.f32.mrf.mxu0
      %v1457 = vadd.f32 %v936, %v1456
      %v1458 = vpop.f32.mrf.mxu0
      %v1459 = vadd.f32 %v940, %v1458
      %1460 = vmatprep.mubr.bf16.mxu0 0
      %1461 = vmatmul.mubr.bf16.gmra.mxu0 %v888
      %v1462 = vpop.f32.mrf.mxu0
      %v1463 = vadd.f32 %v936, %v1462
      %v1464 = vpop.f32.mrf.mxu0
      %v1465 = vadd.f32 %v940, %v1464
      %v1466 = vpop.f32.mrf.mxu0
      %v1467 = vadd.f32 %v936, %v1466
      %v1468 = vpop.f32.mrf.mxu0
      %v1469 = vadd.f32 %v940, %v1468
      %1470 = vmatprep.mubr.bf16.mxu0 0
      %1471 = vmatmul.mubr.bf16.gmra.mxu0 %v889
      %v1472 = vpop.f32.mrf.mxu0
      %v1473 = vadd.f32 %v936, %v1472
      %v1474 = vpop.f32.mrf.mxu0
      %v1475 = vadd.f32 %v940, %v1474
      %v1476 = vpop.f32.mrf.mxu0
      %v1477 = vadd.f32 %v936, %v1476
      %v1478 = vpop.f32.mrf.mxu0
      %v1479 = vadd.f32 %v940, %v1478
      %1480 = vmatprep.mubr.bf16.mxu0 0
      %1481 = vmatmul.mubr.bf16.gmra.mxu0 %v890
      %v1482 = vpop.f32.mrf.mxu0
      %v1483 = vadd.f32 %v936, %v1482
      %v1484 = vpop.f32.mrf.mxu0
      %v1485 = vadd.f32 %v940, %v1484
      %v1486 = vpop.f32.mrf.mxu0
      %v1487 = vadd.f32 %v936, %v1486
      %v1488 = vpop.f32.mrf.mxu0
      %v1489 = vadd.f32 %v940, %v1488
      %1490 = vdwg.mxu0
      %v1491 = vmax.f32 %v1140, %v1142
      %v1492 = vmax.f32 %v1144, %v1146
      %v1493 = vmax.f32 %v1150, %v1152
      %v1494 = vmax.f32 %v1154, %v1156
      %v1495 = vmax.f32 %v1160, %v1162
      %v1496 = vmax.f32 %v1164, %v1166
      %v1497 = vmax.f32 %v1170, %v1172
      %v1498 = vmax.f32 %v1174, %v1176
      %v1499 = vmax.f32 %v1180, %v1182
      %v1500 = vmax.f32 %v1184, %v1186
      %v1501 = vmax.f32 %v1190, %v1192
      %v1502 = vmax.f32 %v1194, %v1196
      %v1503 = vmax.f32 %v1200, %v1202
      %v1504 = vmax.f32 %v1204, %v1206
      %v1505 = vmax.f32 %v1210, %v1212
      %v1506 = vmax.f32 %v1214, %v1216
      %v1507 = vmax.f32 %v1220, %v1222
      %v1508 = vmax.f32 %v1224, %v1226
      %v1509 = vmax.f32 %v1230, %v1232
      %v1510 = vmax.f32 %v1234, %v1236
      %v1511 = vmax.f32 %v1240, %v1242
      %v1512 = vmax.f32 %v1244, %v1246
      %v1513 = vmax.f32 %v1250, %v1252
      %v1514 = vmax.f32 %v1254, %v1256
      %v1515 = vmax.f32 %v1260, %v1262
      %v1516 = vmax.f32 %v1264, %v1266
      %v1517 = vmax.f32 %v1270, %v1272
      %v1518 = vmax.f32 %v1274, %v1276
      %v1519 = vmax.f32 %v1280, %v1282
      %v1520 = vmax.f32 %v1284, %v1286
      %v1521 = vmax.f32 %v1290, %v1292
      %v1522 = vmax.f32 %v1294, %v1296
      %v1523 = vmax.f32 %v1491, %v1333
      %v1524 = vmax.f32 %v1492, %v1337
      %v1525 = vmax.f32 %v1493, %v1343
      %v1526 = vmax.f32 %v1494, %v1347
      %v1527 = vmax.f32 %v1495, %v1353
      %v1528 = vmax.f32 %v1496, %v1357
      %v1529 = vmax.f32 %v1497, %v1363
      %v1530 = vmax.f32 %v1498, %v1367
      %v1531 = vmax.f32 %v1499, %v1373
      %v1532 = vmax.f32 %v1500, %v1377
      %v1533 = vmax.f32 %v1501, %v1383
      %v1534 = vmax.f32 %v1502, %v1387
      %v1535 = vmax.f32 %v1503, %v1393
      %v1536 = vmax.f32 %v1504, %v1397
      %v1537 = vmax.f32 %v1505, %v1403
      %v1538 = vmax.f32 %v1506, %v1407
      %v1539 = vmax.f32 %v1507, %v1413
      %v1540 = vmax.f32 %v1508, %v1417
      %v1541 = vmax.f32 %v1509, %v1423
      %v1542 = vmax.f32 %v1510, %v1427
      %v1543 = vmax.f32 %v1511, %v1433
      %v1544 = vmax.f32 %v1512, %v1437
      %v1545 = vmax.f32 %v1513, %v1443
      %v1546 = vmax.f32 %v1514, %v1447
      %v1547 = vmax.f32 %v1515, %v1453
      %v1548 = vmax.f32 %v1516, %v1457
      %v1549 = vmax.f32 %v1517, %v1463
      %v1550 = vmax.f32 %v1518, %v1467
      %v1551 = vmax.f32 %v1519, %v1473
      %v1552 = vmax.f32 %v1520, %v1477
      %v1553 = vmax.f32 %v1521, %v1483
      %v1554 = vmax.f32 %v1522, %v1487
      %v1555 = vmax.f32 %v1523, %v1335
      %v1556 = vmax.f32 %v1524, %v1339
      %v1557 = vmax.f32 %v1525, %v1345
      %v1558 = vmax.f32 %v1526, %v1349
      %v1559 = vmax.f32 %v1527, %v1355
      %v1560 = vmax.f32 %v1528, %v1359
      %v1561 = vmax.f32 %v1529, %v1365
      %v1562 = vmax.f32 %v1530, %v1369
      %v1563 = vmax.f32 %v1531, %v1375
      %v1564 = vmax.f32 %v1532, %v1379
      %v1565 = vmax.f32 %v1533, %v1385
      %v1566 = vmax.f32 %v1534, %v1389
      %v1567 = vmax.f32 %v1535, %v1395
      %v1568 = vmax.f32 %v1536, %v1399
      %v1569 = vmax.f32 %v1537, %v1405
      %v1570 = vmax.f32 %v1538, %v1409
      %v1571 = vmax.f32 %v1539, %v1415
      %v1572 = vmax.f32 %v1540, %v1419
      %v1573 = vmax.f32 %v1541, %v1425
      %v1574 = vmax.f32 %v1542, %v1429
      %v1575 = vmax.f32 %v1543, %v1435
      %v1576 = vmax.f32 %v1544, %v1439
      %v1577 = vmax.f32 %v1545, %v1445
      %v1578 = vmax.f32 %v1546, %v1449
      %v1579 = vmax.f32 %v1547, %v1455
      %v1580 = vmax.f32 %v1548, %v1459
      %v1581 = vmax.f32 %v1549, %v1465
      %v1582 = vmax.f32 %v1550, %v1469
      %v1583 = vmax.f32 %v1551, %v1475
      %v1584 = vmax.f32 %v1552, %v1479
      %v1585 = vmax.f32 %v1553, %v1485
      %v1586 = vmax.f32 %v1554, %v1489
      %v1587 = vsub.f32 %v1140, %v1555
      %v1588 = vsub.f32 %v1144, %v1556
      %v1589 = vsub.f32 %v1150, %v1557
      %v1590 = vsub.f32 %v1154, %v1558
      %v1591 = vsub.f32 %v1160, %v1559
      %v1592 = vsub.f32 %v1164, %v1560
      %v1593 = vsub.f32 %v1170, %v1561
      %v1594 = vsub.f32 %v1174, %v1562
      %v1595 = vsub.f32 %v1180, %v1563
      %v1596 = vsub.f32 %v1184, %v1564
      %v1597 = vsub.f32 %v1190, %v1565
      %v1598 = vsub.f32 %v1194, %v1566
      %v1599 = vsub.f32 %v1200, %v1567
      %v1600 = vsub.f32 %v1204, %v1568
      %v1601 = vsub.f32 %v1210, %v1569
      %v1602 = vsub.f32 %v1214, %v1570
      %v1603 = vsub.f32 %v1220, %v1571
      %v1604 = vsub.f32 %v1224, %v1572
      %v1605 = vsub.f32 %v1230, %v1573
      %v1606 = vsub.f32 %v1234, %v1574
      %v1607 = vsub.f32 %v1240, %v1575
      %v1608 = vsub.f32 %v1244, %v1576
      %v1609 = vsub.f32 %v1250, %v1577
      %v1610 = vsub.f32 %v1254, %v1578
      %v1611 = vsub.f32 %v1260, %v1579
      %v1612 = vsub.f32 %v1264, %v1580
      %v1613 = vsub.f32 %v1270, %v1581
      %v1614 = vsub.f32 %v1274, %v1582
      %v1615 = vsub.f32 %v1280, %v1583
      %v1616 = vsub.f32 %v1284, %v1584
      %v1617 = vsub.f32 %v1290, %v1585
      %v1618 = vsub.f32 %v1294, %v1586
      %v1619 = vmul.f32 %v1587, 1.442695
      %v1620 = vpow.pop %v1619
      %v1621 = vmul.f32 %v1588, 1.442695
      %v1622 = vpow.pop %v1621
      %v1623 = vmul.f32 %v1589, 1.442695
      %v1624 = vpow.pop %v1623
      %v1625 = vmul.f32 %v1590, 1.442695
      %v1626 = vpow.pop %v1625
      %v1627 = vmul.f32 %v1591, 1.442695
      %v1628 = vpow.pop %v1627
      %v1629 = vmul.f32 %v1592, 1.442695
      %v1630 = vpow.pop %v1629
      %v1631 = vmul.f32 %v1593, 1.442695
      %v1632 = vpow.pop %v1631
      %v1633 = vmul.f32 %v1594, 1.442695
      %v1634 = vpow.pop %v1633
      %v1635 = vmul.f32 %v1595, 1.442695
      %v1636 = vpow.pop %v1635
      %v1637 = vmul.f32 %v1596, 1.442695
      %v1638 = vpow.pop %v1637
      %v1639 = vmul.f32 %v1597, 1.442695
      %v1640 = vpow.pop %v1639
      %v1641 = vmul.f32 %v1598, 1.442695
      %v1642 = vpow.pop %v1641
      %v1643 = vmul.f32 %v1599, 1.442695
      %v1644 = vpow.pop %v1643
      %v1645 = vmul.f32 %v1600, 1.442695
      %v1646 = vpow.pop %v1645
      %v1647 = vmul.f32 %v1601, 1.442695
      %v1648 = vpow.pop %v1647
      %v1649 = vmul.f32 %v1602, 1.442695
      %v1650 = vpow.pop %v1649
      %v1651 = vmul.f32 %v1603, 1.442695
      %v1652 = vpow.pop %v1651
      %v1653 = vmul.f32 %v1604, 1.442695
      %v1654 = vpow.pop %v1653
      %v1655 = vmul.f32 %v1605, 1.442695
      %v1656 = vpow.pop %v1655
      %v1657 = vmul.f32 %v1606, 1.442695
      %v1658 = vpow.pop %v1657
      %v1659 = vmul.f32 %v1607, 1.442695
      %v1660 = vpow.pop %v1659
      %v1661 = vmul.f32 %v1608, 1.442695
      %v1662 = vpow.pop %v1661
      %v1663 = vmul.f32 %v1609, 1.442695
      %v1664 = vpow.pop %v1663
      %v1665 = vmul.f32 %v1610, 1.442695
      %v1666 = vpow.pop %v1665
      %v1667 = vmul.f32 %v1611, 1.442695
      %v1668 = vpow.pop %v1667
      %v1669 = vmul.f32 %v1612, 1.442695
      %v1670 = vpow.pop %v1669
      %v1671 = vmul.f32 %v1613, 1.442695
      %v1672 = vpow.pop %v1671
      %v1673 = vmul.f32 %v1614, 1.442695
      %v1674 = vpow.pop %v1673
      %v1675 = vmul.f32 %v1615, 1.442695
      %v1676 = vpow.pop %v1675
      %v1677 = vmul.f32 %v1616, 1.442695
      %v1678 = vpow.pop %v1677
      %v1679 = vmul.f32 %v1617, 1.442695
      %v1680 = vpow.pop %v1679
      %v1681 = vmul.f32 %v1618, 1.442695
      %v1682 = vpow.pop %v1681
      %v1683 = vadd.f32 %v1620, 0.0
      %v1684 = vadd.f32 %v1622, 0.0
      %v1685 = vadd.f32 %v1624, 0.0
      %v1686 = vadd.f32 %v1626, 0.0
      %v1687 = vadd.f32 %v1628, 0.0
      %v1688 = vadd.f32 %v1630, 0.0
      %v1689 = vadd.f32 %v1632, 0.0
      %v1690 = vadd.f32 %v1634, 0.0
      %v1691 = vadd.f32 %v1636, 0.0
      %v1692 = vadd.f32 %v1638, 0.0
      %v1693 = vadd.f32 %v1640, 0.0
      %v1694 = vadd.f32 %v1642, 0.0
      %v1695 = vadd.f32 %v1644, 0.0
      %v1696 = vadd.f32 %v1646, 0.0
      %v1697 = vadd.f32 %v1648, 0.0
      %v1698 = vadd.f32 %v1650, 0.0
      %v1699 = vadd.f32 %v1652, 0.0
      %v1700 = vadd.f32 %v1654, 0.0
      %v1701 = vadd.f32 %v1656, 0.0
      %v1702 = vadd.f32 %v1658, 0.0
      %v1703 = vadd.f32 %v1660, 0.0
      %v1704 = vadd.f32 %v1662, 0.0
      %v1705 = vadd.f32 %v1664, 0.0
      %v1706 = vadd.f32 %v1666, 0.0
      %v1707 = vadd.f32 %v1668, 0.0
      %v1708 = vadd.f32 %v1670, 0.0
      %v1709 = vadd.f32 %v1672, 0.0
      %v1710 = vadd.f32 %v1674, 0.0
      %v1711 = vadd.f32 %v1676, 0.0
      %v1712 = vadd.f32 %v1678, 0.0
      %v1713 = vadd.f32 %v1680, 0.0
      %v1714 = vadd.f32 %v1682, 0.0
      %vm1715 = vcmp.eq.f32.partialorder %v283, 0.0
      %vm1716 = vcmp.eq.f32.partialorder %v284, 0.0
      %vm1717 = vcmp.eq.f32.partialorder %v285, 0.0
      %vm1718 = vcmp.eq.f32.partialorder %v286, 0.0
      %vm1719 = vcmp.eq.f32.partialorder %v287, 0.0
      %vm1720 = vcmp.eq.f32.partialorder %v288, 0.0
      %vm1721 = vcmp.eq.f32.partialorder %v289, 0.0
      %vm1722 = vcmp.eq.f32.partialorder %v290, 0.0
      %vm1723 = vcmp.eq.f32.partialorder %v291, 0.0
      %vm1724 = vcmp.eq.f32.partialorder %v292, 0.0
      %vm1725 = vcmp.eq.f32.partialorder %v293, 0.0
      %vm1726 = vcmp.eq.f32.partialorder %v294, 0.0
      %vm1727 = vcmp.eq.f32.partialorder %v295, 0.0
      %vm1728 = vcmp.eq.f32.partialorder %v296, 0.0
      %vm1729 = vcmp.eq.f32.partialorder %v297, 0.0
      %vm1730 = vcmp.eq.f32.partialorder %v298, 0.0
      %vm1731 = vcmp.eq.f32.partialorder %v299, 0.0
      %vm1732 = vcmp.eq.f32.partialorder %v300, 0.0
      %vm1733 = vcmp.eq.f32.partialorder %v301, 0.0
      %vm1734 = vcmp.eq.f32.partialorder %v302, 0.0
      %vm1735 = vcmp.eq.f32.partialorder %v303, 0.0
      %vm1736 = vcmp.eq.f32.partialorder %v304, 0.0
      %vm1737 = vcmp.eq.f32.partialorder %v305, 0.0
      %vm1738 = vcmp.eq.f32.partialorder %v306, 0.0
      %vm1739 = vcmp.eq.f32.partialorder %v307, 0.0
      %vm1740 = vcmp.eq.f32.partialorder %v308, 0.0
      %vm1741 = vcmp.eq.f32.partialorder %v309, 0.0
      %vm1742 = vcmp.eq.f32.partialorder %v310, 0.0
      %vm1743 = vcmp.eq.f32.partialorder %v311, 0.0
      %vm1744 = vcmp.eq.f32.partialorder %v312, 0.0
      %vm1745 = vcmp.eq.f32.partialorder %v313, 0.0
      %vm1746 = vcmp.eq.f32.partialorder %v314, 0.0
      %v1747 = vsel %vm1715, %v1140, 0.0
      %v1748 = vsel %vm1716, %v1144, 0.0
      %v1749 = vsel %vm1717, %v1150, 0.0
      %v1750 = vsel %vm1718, %v1154, 0.0
      %v1751 = vsel %vm1719, %v1160, 0.0
      %v1752 = vsel %vm1720, %v1164, 0.0
      %v1753 = vsel %vm1721, %v1170, 0.0
      %v1754 = vsel %vm1722, %v1174, 0.0
      %v1755 = vsel %vm1723, %v1180, 0.0
      %v1756 = vsel %vm1724, %v1184, 0.0
      %v1757 = vsel %vm1725, %v1190, 0.0
      %v1758 = vsel %vm1726, %v1194, 0.0
      %v1759 = vsel %vm1727, %v1200, 0.0
      %v1760 = vsel %vm1728, %v1204, 0.0
      %v1761 = vsel %vm1729, %v1210, 0.0
      %v1762 = vsel %vm1730, %v1214, 0.0
      %v1763 = vsel %vm1731, %v1220, 0.0
      %v1764 = vsel %vm1732, %v1224, 0.0
      %v1765 = vsel %vm1733, %v1230, 0.0
      %v1766 = vsel %vm1734, %v1234, 0.0
      %v1767 = vsel %vm1735, %v1240, 0.0
      %v1768 = vsel %vm1736, %v1244, 0.0
      %v1769 = vsel %vm1737, %v1250, 0.0
      %v1770 = vsel %vm1738, %v1254, 0.0
      %v1771 = vsel %vm1739, %v1260, 0.0
      %v1772 = vsel %vm1740, %v1264, 0.0
      %v1773 = vsel %vm1741, %v1270, 0.0
      %v1774 = vsel %vm1742, %v1274, 0.0
      %v1775 = vsel %vm1743, %v1280, 0.0
      %v1776 = vsel %vm1744, %v1284, 0.0
      %v1777 = vsel %vm1745, %v1290, 0.0
      %v1778 = vsel %vm1746, %v1294, 0.0
      %v1779 = vadd.f32 %v1747, 0.0
      %v1780 = vadd.f32 %v1748, 0.0
      %v1781 = vadd.f32 %v1749, 0.0
      %v1782 = vadd.f32 %v1750, 0.0
      %v1783 = vadd.f32 %v1751, 0.0
      %v1784 = vadd.f32 %v1752, 0.0
      %v1785 = vadd.f32 %v1753, 0.0
      %v1786 = vadd.f32 %v1754, 0.0
      %v1787 = vadd.f32 %v1755, 0.0
      %v1788 = vadd.f32 %v1756, 0.0
      %v1789 = vadd.f32 %v1757, 0.0
      %v1790 = vadd.f32 %v1758, 0.0
      %v1791 = vadd.f32 %v1759, 0.0
      %v1792 = vadd.f32 %v1760, 0.0
      %v1793 = vadd.f32 %v1761, 0.0
      %v1794 = vadd.f32 %v1762, 0.0
      %v1795 = vadd.f32 %v1763, 0.0
      %v1796 = vadd.f32 %v1764, 0.0
      %v1797 = vadd.f32 %v1765, 0.0
      %v1798 = vadd.f32 %v1766, 0.0
      %v1799 = vadd.f32 %v1767, 0.0
      %v1800 = vadd.f32 %v1768, 0.0
      %v1801 = vadd.f32 %v1769, 0.0
      %v1802 = vadd.f32 %v1770, 0.0
      %v1803 = vadd.f32 %v1771, 0.0
      %v1804 = vadd.f32 %v1772, 0.0
      %v1805 = vadd.f32 %v1773, 0.0
      %v1806 = vadd.f32 %v1774, 0.0
      %v1807 = vadd.f32 %v1775, 0.0
      %v1808 = vadd.f32 %v1776, 0.0
      %v1809 = vadd.f32 %v1777, 0.0
      %v1810 = vadd.f32 %v1778, 0.0
      %v1811 = vsub.f32 %v1142, %v1555
      %v1812 = vsub.f32 %v1146, %v1556
      %v1813 = vsub.f32 %v1152, %v1557
      %v1814 = vsub.f32 %v1156, %v1558
      %v1815 = vsub.f32 %v1162, %v1559
      %v1816 = vsub.f32 %v1166, %v1560
      %v1817 = vsub.f32 %v1172, %v1561
      %v1818 = vsub.f32 %v1176, %v1562
      %v1819 = vsub.f32 %v1182, %v1563
      %v1820 = vsub.f32 %v1186, %v1564
      %v1821 = vsub.f32 %v1192, %v1565
      %v1822 = vsub.f32 %v1196, %v1566
      %v1823 = vsub.f32 %v1202, %v1567
      %v1824 = vsub.f32 %v1206, %v1568
      %v1825 = vsub.f32 %v1212, %v1569
      %v1826 = vsub.f32 %v1216, %v1570
      %v1827 = vsub.f32 %v1222, %v1571
      %v1828 = vsub.f32 %v1226, %v1572
      %v1829 = vsub.f32 %v1232, %v1573
      %v1830 = vsub.f32 %v1236, %v1574
      %v1831 = vsub.f32 %v1242, %v1575
      %v1832 = vsub.f32 %v1246, %v1576
      %v1833 = vsub.f32 %v1252, %v1577
      %v1834 = vsub.f32 %v1256, %v1578
      %v1835 = vsub.f32 %v1262, %v1579
      %v1836 = vsub.f32 %v1266, %v1580
      %v1837 = vsub.f32 %v1272, %v1581
      %v1838 = vsub.f32 %v1276, %v1582
      %v1839 = vsub.f32 %v1282, %v1583
      %v1840 = vsub.f32 %v1286, %v1584
      %v1841 = vsub.f32 %v1292, %v1585
      %v1842 = vsub.f32 %v1296, %v1586
      %v1843 = vmul.f32 %v1811, 1.442695
      %v1844 = vpow.pop %v1843
      %v1845 = vmul.f32 %v1812, 1.442695
      %v1846 = vpow.pop %v1845
      %v1847 = vmul.f32 %v1813, 1.442695
      %v1848 = vpow.pop %v1847
      %v1849 = vmul.f32 %v1814, 1.442695
      %v1850 = vpow.pop %v1849
      %v1851 = vmul.f32 %v1815, 1.442695
      %v1852 = vpow.pop %v1851
      %v1853 = vmul.f32 %v1816, 1.442695
      %v1854 = vpow.pop %v1853
      %v1855 = vmul.f32 %v1817, 1.442695
      %v1856 = vpow.pop %v1855
      %v1857 = vmul.f32 %v1818, 1.442695
      %v1858 = vpow.pop %v1857
      %v1859 = vmul.f32 %v1819, 1.442695
      %v1860 = vpow.pop %v1859
      %v1861 = vmul.f32 %v1820, 1.442695
      %v1862 = vpow.pop %v1861
      %v1863 = vmul.f32 %v1821, 1.442695
      %v1864 = vpow.pop %v1863
      %v1865 = vmul.f32 %v1822, 1.442695
      %v1866 = vpow.pop %v1865
      %v1867 = vmul.f32 %v1823, 1.442695
      %v1868 = vpow.pop %v1867
      %v1869 = vmul.f32 %v1824, 1.442695
      %v1870 = vpow.pop %v1869
      %v1871 = vmul.f32 %v1825, 1.442695
      %v1872 = vpow.pop %v1871
      %v1873 = vmul.f32 %v1826, 1.442695
      %v1874 = vpow.pop %v1873
      %v1875 = vmul.f32 %v1827, 1.442695
      %v1876 = vpow.pop %v1875
      %v1877 = vmul.f32 %v1828, 1.442695
      %v1878 = vpow.pop %v1877
      %v1879 = vmul.f32 %v1829, 1.442695
      %v1880 = vpow.pop %v1879
      %v1881 = vmul.f32 %v1830, 1.442695
      %v1882 = vpow.pop %v1881
      %v1883 = vmul.f32 %v1831, 1.442695
      %v1884 = vpow.pop %v1883
      %v1885 = vmul.f32 %v1832, 1.442695
      %v1886 = vpow.pop %v1885
      %v1887 = vmul.f32 %v1833, 1.442695
      %v1888 = vpow.pop %v1887
      %v1889 = vmul.f32 %v1834, 1.442695
      %v1890 = vpow.pop %v1889
      %v1891 = vmul.f32 %v1835, 1.442695
      %v1892 = vpow.pop %v1891
      %v1893 = vmul.f32 %v1836, 1.442695
      %v1894 = vpow.pop %v1893
      %v1895 = vmul.f32 %v1837, 1.442695
      %v1896 = vpow.pop %v1895
      %v1897 = vmul.f32 %v1838, 1.442695
      %v1898 = vpow.pop %v1897
      %v1899 = vmul.f32 %v1839, 1.442695
      %v1900 = vpow.pop %v1899
      %v1901 = vmul.f32 %v1840, 1.442695
      %v1902 = vpow.pop %v1901
      %v1903 = vmul.f32 %v1841, 1.442695
      %v1904 = vpow.pop %v1903
      %v1905 = vmul.f32 %v1842, 1.442695
      %v1906 = vpow.pop %v1905
      %v1907 = vadd.f32 %v1683, %v1844
      %v1908 = vadd.f32 %v1684, %v1846
      %v1909 = vadd.f32 %v1685, %v1848
      %v1910 = vadd.f32 %v1686, %v1850
      %v1911 = vadd.f32 %v1687, %v1852
      %v1912 = vadd.f32 %v1688, %v1854
      %v1913 = vadd.f32 %v1689, %v1856
      %v1914 = vadd.f32 %v1690, %v1858
      %v1915 = vadd.f32 %v1691, %v1860
      %v1916 = vadd.f32 %v1692, %v1862
      %v1917 = vadd.f32 %v1693, %v1864
      %v1918 = vadd.f32 %v1694, %v1866
      %v1919 = vadd.f32 %v1695, %v1868
      %v1920 = vadd.f32 %v1696, %v1870
      %v1921 = vadd.f32 %v1697, %v1872
      %v1922 = vadd.f32 %v1698, %v1874
      %v1923 = vadd.f32 %v1699, %v1876
      %v1924 = vadd.f32 %v1700, %v1878
      %v1925 = vadd.f32 %v1701, %v1880
      %v1926 = vadd.f32 %v1702, %v1882
      %v1927 = vadd.f32 %v1703, %v1884
      %v1928 = vadd.f32 %v1704, %v1886
      %v1929 = vadd.f32 %v1705, %v1888
      %v1930 = vadd.f32 %v1706, %v1890
      %v1931 = vadd.f32 %v1707, %v1892
      %v1932 = vadd.f32 %v1708, %v1894
      %v1933 = vadd.f32 %v1709, %v1896
      %v1934 = vadd.f32 %v1710, %v1898
      %v1935 = vadd.f32 %v1711, %v1900
      %v1936 = vadd.f32 %v1712, %v1902
      %v1937 = vadd.f32 %v1713, %v1904
      %v1938 = vadd.f32 %v1714, %v1906
      %vm1939 = vcmp.eq.f32.partialorder %v283, 1.0
      %vm1940 = vcmp.eq.f32.partialorder %v284, 1.0
      %vm1941 = vcmp.eq.f32.partialorder %v285, 1.0
      %vm1942 = vcmp.eq.f32.partialorder %v286, 1.0
      %vm1943 = vcmp.eq.f32.partialorder %v287, 1.0
      %vm1944 = vcmp.eq.f32.partialorder %v288, 1.0
      %vm1945 = vcmp.eq.f32.partialorder %v289, 1.0
      %vm1946 = vcmp.eq.f32.partialorder %v290, 1.0
      %vm1947 = vcmp.eq.f32.partialorder %v291, 1.0
      %vm1948 = vcmp.eq.f32.partialorder %v292, 1.0
      %vm1949 = vcmp.eq.f32.partialorder %v293, 1.0
      %vm1950 = vcmp.eq.f32.partialorder %v294, 1.0
      %vm1951 = vcmp.eq.f32.partialorder %v295, 1.0
      %vm1952 = vcmp.eq.f32.partialorder %v296, 1.0
      %vm1953 = vcmp.eq.f32.partialorder %v297, 1.0
      %vm1954 = vcmp.eq.f32.partialorder %v298, 1.0
      %vm1955 = vcmp.eq.f32.partialorder %v299, 1.0
      %vm1956 = vcmp.eq.f32.partialorder %v300, 1.0
      %vm1957 = vcmp.eq.f32.partialorder %v301, 1.0
      %vm1958 = vcmp.eq.f32.partialorder %v302, 1.0
      %vm1959 = vcmp.eq.f32.partialorder %v303, 1.0
      %vm1960 = vcmp.eq.f32.partialorder %v304, 1.0
      %vm1961 = vcmp.eq.f32.partialorder %v305, 1.0
      %vm1962 = vcmp.eq.f32.partialorder %v306, 1.0
      %vm1963 = vcmp.eq.f32.partialorder %v307, 1.0
      %vm1964 = vcmp.eq.f32.partialorder %v308, 1.0
      %vm1965 = vcmp.eq.f32.partialorder %v309, 1.0
      %vm1966 = vcmp.eq.f32.partialorder %v310, 1.0
      %vm1967 = vcmp.eq.f32.partialorder %v311, 1.0
      %vm1968 = vcmp.eq.f32.partialorder %v312, 1.0
      %vm1969 = vcmp.eq.f32.partialorder %v313, 1.0
      %vm1970 = vcmp.eq.f32.partialorder %v314, 1.0
      %v1971 = vsel %vm1939, %v1142, 0.0
      %v1972 = vsel %vm1940, %v1146, 0.0
      %v1973 = vsel %vm1941, %v1152, 0.0
      %v1974 = vsel %vm1942, %v1156, 0.0
      %v1975 = vsel %vm1943, %v1162, 0.0
      %v1976 = vsel %vm1944, %v1166, 0.0
      %v1977 = vsel %vm1945, %v1172, 0.0
      %v1978 = vsel %vm1946, %v1176, 0.0
      %v1979 = vsel %vm1947, %v1182, 0.0
      %v1980 = vsel %vm1948, %v1186, 0.0
      %v1981 = vsel %vm1949, %v1192, 0.0
      %v1982 = vsel %vm1950, %v1196, 0.0
      %v1983 = vsel %vm1951, %v1202, 0.0
      %v1984 = vsel %vm1952, %v1206, 0.0
      %v1985 = vsel %vm1953, %v1212, 0.0
      %v1986 = vsel %vm1954, %v1216, 0.0
      %v1987 = vsel %vm1955, %v1222, 0.0
      %v1988 = vsel %vm1956, %v1226, 0.0
      %v1989 = vsel %vm1957, %v1232, 0.0
      %v1990 = vsel %vm1958, %v1236, 0.0
      %v1991 = vsel %vm1959, %v1242, 0.0
      %v1992 = vsel %vm1960, %v1246, 0.0
      %v1993 = vsel %vm1961, %v1252, 0.0
      %v1994 = vsel %vm1962, %v1256, 0.0
      %v1995 = vsel %vm1963, %v1262, 0.0
      %v1996 = vsel %vm1964, %v1266, 0.0
      %v1997 = vsel %vm1965, %v1272, 0.0
      %v1998 = vsel %vm1966, %v1276, 0.0
      %v1999 = vsel %vm1967, %v1282, 0.0
      %v2000 = vsel %vm1968, %v1286, 0.0
      %v2001 = vsel %vm1969, %v1292, 0.0
      %v2002 = vsel %vm1970, %v1296, 0.0
      %v2003 = vadd.f32 %v1779, %v1971
      %v2004 = vadd.f32 %v1780, %v1972
      %v2005 = vadd.f32 %v1781, %v1973
      %v2006 = vadd.f32 %v1782, %v1974
      %v2007 = vadd.f32 %v1783, %v1975
      %v2008 = vadd.f32 %v1784, %v1976
      %v2009 = vadd.f32 %v1785, %v1977
      %v2010 = vadd.f32 %v1786, %v1978
      %v2011 = vadd.f32 %v1787, %v1979
      %v2012 = vadd.f32 %v1788, %v1980
      %v2013 = vadd.f32 %v1789, %v1981
      %v2014 = vadd.f32 %v1790, %v1982
      %v2015 = vadd.f32 %v1791, %v1983
      %v2016 = vadd.f32 %v1792, %v1984
      %v2017 = vadd.f32 %v1793, %v1985
      %v2018 = vadd.f32 %v1794, %v1986
      %v2019 = vadd.f32 %v1795, %v1987
      %v2020 = vadd.f32 %v1796, %v1988
      %v2021 = vadd.f32 %v1797, %v1989
      %v2022 = vadd.f32 %v1798, %v1990
      %v2023 = vadd.f32 %v1799, %v1991
      %v2024 = vadd.f32 %v1800, %v1992
      %v2025 = vadd.f32 %v1801, %v1993
      %v2026 = vadd.f32 %v1802, %v1994
      %v2027 = vadd.f32 %v1803, %v1995
      %v2028 = vadd.f32 %v1804, %v1996
      %v2029 = vadd.f32 %v1805, %v1997
      %v2030 = vadd.f32 %v1806, %v1998
      %v2031 = vadd.f32 %v1807, %v1999
      %v2032 = vadd.f32 %v1808, %v2000
      %v2033 = vadd.f32 %v1809, %v2001
      %v2034 = vadd.f32 %v1810, %v2002
      %v2035 = vsub.f32 %v1333, %v1555
      %v2036 = vsub.f32 %v1337, %v1556
      %v2037 = vsub.f32 %v1343, %v1557
      %v2038 = vsub.f32 %v1347, %v1558
      %v2039 = vsub.f32 %v1353, %v1559
      %v2040 = vsub.f32 %v1357, %v1560
      %v2041 = vsub.f32 %v1363, %v1561
      %v2042 = vsub.f32 %v1367, %v1562
      %v2043 = vsub.f32 %v1373, %v1563
      %v2044 = vsub.f32 %v1377, %v1564
      %v2045 = vsub.f32 %v1383, %v1565
      %v2046 = vsub.f32 %v1387, %v1566
      %v2047 = vsub.f32 %v1393, %v1567
      %v2048 = vsub.f32 %v1397, %v1568
      %v2049 = vsub.f32 %v1403, %v1569
      %v2050 = vsub.f32 %v1407, %v1570
      %v2051 = vsub.f32 %v1413, %v1571
      %v2052 = vsub.f32 %v1417, %v1572
      %v2053 = vsub.f32 %v1423, %v1573
      %v2054 = vsub.f32 %v1427, %v1574
      %v2055 = vsub.f32 %v1433, %v1575
      %v2056 = vsub.f32 %v1437, %v1576
      %v2057 = vsub.f32 %v1443, %v1577
      %v2058 = vsub.f32 %v1447, %v1578
      %v2059 = vsub.f32 %v1453, %v1579
      %v2060 = vsub.f32 %v1457, %v1580
      %v2061 = vsub.f32 %v1463, %v1581
      %v2062 = vsub.f32 %v1467, %v1582
      %v2063 = vsub.f32 %v1473, %v1583
      %v2064 = vsub.f32 %v1477, %v1584
      %v2065 = vsub.f32 %v1483, %v1585
      %v2066 = vsub.f32 %v1487, %v1586
      %v2067 = vmul.f32 %v2035, 1.442695
      %v2068 = vpow.pop %v2067
      %v2069 = vmul.f32 %v2036, 1.442695
      %v2070 = vpow.pop %v2069
      %v2071 = vmul.f32 %v2037, 1.442695
      %v2072 = vpow.pop %v2071
      %v2073 = vmul.f32 %v2038, 1.442695
      %v2074 = vpow.pop %v2073
      %v2075 = vmul.f32 %v2039, 1.442695
      %v2076 = vpow.pop %v2075
      %v2077 = vmul.f32 %v2040, 1.442695
      %v2078 = vpow.pop %v2077
      %v2079 = vmul.f32 %v2041, 1.442695
      %v2080 = vpow.pop %v2079
      %v2081 = vmul.f32 %v2042, 1.442695
      %v2082 = vpow.pop %v2081
      %v2083 = vmul.f32 %v2043, 1.442695
      %v2084 = vpow.pop %v2083
      %v2085 = vmul.f32 %v2044, 1.442695
      %v2086 = vpow.pop %v2085
      %v2087 = vmul.f32 %v2045, 1.442695
      %v2088 = vpow.pop %v2087
      %v2089 = vmul.f32 %v2046, 1.442695
      %v2090 = vpow.pop %v2089
      %v2091 = vmul.f32 %v2047, 1.442695
      %v2092 = vpow.pop %v2091
      %v2093 = vmul.f32 %v2048, 1.442695
      %v2094 = vpow.pop %v2093
      %v2095 = vmul.f32 %v2049, 1.442695
      %v2096 = vpow.pop %v2095
      %v2097 = vmul.f32 %v2050, 1.442695
      %v2098 = vpow.pop %v2097
      %v2099 = vmul.f32 %v2051, 1.442695
      %v2100 = vpow.pop %v2099
      %v2101 = vmul.f32 %v2052, 1.442695
      %v2102 = vpow.pop %v2101
      %v2103 = vmul.f32 %v2053, 1.442695
      %v2104 = vpow.pop %v2103
      %v2105 = vmul.f32 %v2054, 1.442695
      %v2106 = vpow.pop %v2105
      %v2107 = vmul.f32 %v2055, 1.442695
      %v2108 = vpow.pop %v2107
      %v2109 = vmul.f32 %v2056, 1.442695
      %v2110 = vpow.pop %v2109
      %v2111 = vmul.f32 %v2057, 1.442695
      %v2112 = vpow.pop %v2111
      %v2113 = vmul.f32 %v2058, 1.442695
      %v2114 = vpow.pop %v2113
      %v2115 = vmul.f32 %v2059, 1.442695
      %v2116 = vpow.pop %v2115
      %v2117 = vmul.f32 %v2060, 1.442695
      %v2118 = vpow.pop %v2117
      %v2119 = vmul.f32 %v2061, 1.442695
      %v2120 = vpow.pop %v2119
      %v2121 = vmul.f32 %v2062, 1.442695
      %v2122 = vpow.pop %v2121
      %v2123 = vmul.f32 %v2063, 1.442695
      %v2124 = vpow.pop %v2123
      %v2125 = vmul.f32 %v2064, 1.442695
      %v2126 = vpow.pop %v2125
      %v2127 = vmul.f32 %v2065, 1.442695
      %v2128 = vpow.pop %v2127
      %v2129 = vmul.f32 %v2066, 1.442695
      %v2130 = vpow.pop %v2129
      %v2131 = vadd.f32 %v1907, %v2068
      %v2132 = vadd.f32 %v1908, %v2070
      %v2133 = vadd.f32 %v1909, %v2072
      %v2134 = vadd.f32 %v1910, %v2074
      %v2135 = vadd.f32 %v1911, %v2076
      %v2136 = vadd.f32 %v1912, %v2078
      %v2137 = vadd.f32 %v1913, %v2080
      %v2138 = vadd.f32 %v1914, %v2082
      %v2139 = vadd.f32 %v1915, %v2084
      %v2140 = vadd.f32 %v1916, %v2086
      %v2141 = vadd.f32 %v1917, %v2088
      %v2142 = vadd.f32 %v1918, %v2090
      %v2143 = vadd.f32 %v1919, %v2092
      %v2144 = vadd.f32 %v1920, %v2094
      %v2145 = vadd.f32 %v1921, %v2096
      %v2146 = vadd.f32 %v1922, %v2098
      %v2147 = vadd.f32 %v1923, %v2100
      %v2148 = vadd.f32 %v1924, %v2102
      %v2149 = vadd.f32 %v1925, %v2104
      %v2150 = vadd.f32 %v1926, %v2106
      %v2151 = vadd.f32 %v1927, %v2108
      %v2152 = vadd.f32 %v1928, %v2110
      %v2153 = vadd.f32 %v1929, %v2112
      %v2154 = vadd.f32 %v1930, %v2114
      %v2155 = vadd.f32 %v1931, %v2116
      %v2156 = vadd.f32 %v1932, %v2118
      %v2157 = vadd.f32 %v1933, %v2120
      %v2158 = vadd.f32 %v1934, %v2122
      %v2159 = vadd.f32 %v1935, %v2124
      %v2160 = vadd.f32 %v1936, %v2126
      %v2161 = vadd.f32 %v1937, %v2128
      %v2162 = vadd.f32 %v1938, %v2130
      %vm2163 = vcmp.eq.f32.partialorder %v283, 2.0
      %vm2164 = vcmp.eq.f32.partialorder %v284, 2.0
      %vm2165 = vcmp.eq.f32.partialorder %v285, 2.0
      %vm2166 = vcmp.eq.f32.partialorder %v286, 2.0
      %vm2167 = vcmp.eq.f32.partialorder %v287, 2.0
      %vm2168 = vcmp.eq.f32.partialorder %v288, 2.0
      %vm2169 = vcmp.eq.f32.partialorder %v289, 2.0
      %vm2170 = vcmp.eq.f32.partialorder %v290, 2.0
      %vm2171 = vcmp.eq.f32.partialorder %v291, 2.0
      %vm2172 = vcmp.eq.f32.partialorder %v292, 2.0
      %vm2173 = vcmp.eq.f32.partialorder %v293, 2.0
      %vm2174 = vcmp.eq.f32.partialorder %v294, 2.0
      %vm2175 = vcmp.eq.f32.partialorder %v295, 2.0
      %vm2176 = vcmp.eq.f32.partialorder %v296, 2.0
      %vm2177 = vcmp.eq.f32.partialorder %v297, 2.0
      %vm2178 = vcmp.eq.f32.partialorder %v298, 2.0
      %vm2179 = vcmp.eq.f32.partialorder %v299, 2.0
      %vm2180 = vcmp.eq.f32.partialorder %v300, 2.0
      %vm2181 = vcmp.eq.f32.partialorder %v301, 2.0
      %vm2182 = vcmp.eq.f32.partialorder %v302, 2.0
      %vm2183 = vcmp.eq.f32.partialorder %v303, 2.0
      %vm2184 = vcmp.eq.f32.partialorder %v304, 2.0
      %vm2185 = vcmp.eq.f32.partialorder %v305, 2.0
      %vm2186 = vcmp.eq.f32.partialorder %v306, 2.0
      %vm2187 = vcmp.eq.f32.partialorder %v307, 2.0
      %vm2188 = vcmp.eq.f32.partialorder %v308, 2.0
      %vm2189 = vcmp.eq.f32.partialorder %v309, 2.0
      %vm2190 = vcmp.eq.f32.partialorder %v310, 2.0
      %vm2191 = vcmp.eq.f32.partialorder %v311, 2.0
      %vm2192 = vcmp.eq.f32.partialorder %v312, 2.0
      %vm2193 = vcmp.eq.f32.partialorder %v313, 2.0
      %vm2194 = vcmp.eq.f32.partialorder %v314, 2.0
      %v2195 = vsel %vm2163, %v1333, 0.0
      %v2196 = vsel %vm2164, %v1337, 0.0
      %v2197 = vsel %vm2165, %v1343, 0.0
      %v2198 = vsel %vm2166, %v1347, 0.0
      %v2199 = vsel %vm2167, %v1353, 0.0
      %v2200 = vsel %vm2168, %v1357, 0.0
      %v2201 = vsel %vm2169, %v1363, 0.0
      %v2202 = vsel %vm2170, %v1367, 0.0
      %v2203 = vsel %vm2171, %v1373, 0.0
      %v2204 = vsel %vm2172, %v1377, 0.0
      %v2205 = vsel %vm2173, %v1383, 0.0
      %v2206 = vsel %vm2174, %v1387, 0.0
      %v2207 = vsel %vm2175, %v1393, 0.0
      %v2208 = vsel %vm2176, %v1397, 0.0
      %v2209 = vsel %vm2177, %v1403, 0.0
      %v2210 = vsel %vm2178, %v1407, 0.0
      %v2211 = vsel %vm2179, %v1413, 0.0
      %v2212 = vsel %vm2180, %v1417, 0.0
      %v2213 = vsel %vm2181, %v1423, 0.0
      %v2214 = vsel %vm2182, %v1427, 0.0
      %v2215 = vsel %vm2183, %v1433, 0.0
      %v2216 = vsel %vm2184, %v1437, 0.0
      %v2217 = vsel %vm2185, %v1443, 0.0
      %v2218 = vsel %vm2186, %v1447, 0.0
      %v2219 = vsel %vm2187, %v1453, 0.0
      %v2220 = vsel %vm2188, %v1457, 0.0
      %v2221 = vsel %vm2189, %v1463, 0.0
      %v2222 = vsel %vm2190, %v1467, 0.0
      %v2223 = vsel %vm2191, %v1473, 0.0
      %v2224 = vsel %vm2192, %v1477, 0.0
      %v2225 = vsel %vm2193, %v1483, 0.0
      %v2226 = vsel %vm2194, %v1487, 0.0
      %v2227 = vadd.f32 %v2003, %v2195
      %v2228 = vadd.f32 %v2004, %v2196
      %v2229 = vadd.f32 %v2005, %v2197
      %v2230 = vadd.f32 %v2006, %v2198
      %v2231 = vadd.f32 %v2007, %v2199
      %v2232 = vadd.f32 %v2008, %v2200
      %v2233 = vadd.f32 %v2009, %v2201
      %v2234 = vadd.f32 %v2010, %v2202
      %v2235 = vadd.f32 %v2011, %v2203
      %v2236 = vadd.f32 %v2012, %v2204
      %v2237 = vadd.f32 %v2013, %v2205
      %v2238 = vadd.f32 %v2014, %v2206
      %v2239 = vadd.f32 %v2015, %v2207
      %v2240 = vadd.f32 %v2016, %v2208
      %v2241 = vadd.f32 %v2017, %v2209
      %v2242 = vadd.f32 %v2018, %v2210
      %v2243 = vadd.f32 %v2019, %v2211
      %v2244 = vadd.f32 %v2020, %v2212
      %v2245 = vadd.f32 %v2021, %v2213
      %v2246 = vadd.f32 %v2022, %v2214
      %v2247 = vadd.f32 %v2023, %v2215
      %v2248 = vadd.f32 %v2024, %v2216
      %v2249 = vadd.f32 %v2025, %v2217
      %v2250 = vadd.f32 %v2026, %v2218
      %v2251 = vadd.f32 %v2027, %v2219
      %v2252 = vadd.f32 %v2028, %v2220
      %v2253 = vadd.f32 %v2029, %v2221
      %v2254 = vadd.f32 %v2030, %v2222
      %v2255 = vadd.f32 %v2031, %v2223
      %v2256 = vadd.f32 %v2032, %v2224
      %v2257 = vadd.f32 %v2033, %v2225
      %v2258 = vadd.f32 %v2034, %v2226
      %v2259 = vsub.f32 %v1335, %v1555
      %v2260 = vsub.f32 %v1339, %v1556
      %v2261 = vsub.f32 %v1345, %v1557
      %v2262 = vsub.f32 %v1349, %v1558
      %v2263 = vsub.f32 %v1355, %v1559
      %v2264 = vsub.f32 %v1359, %v1560
      %v2265 = vsub.f32 %v1365, %v1561
      %v2266 = vsub.f32 %v1369, %v1562
      %v2267 = vsub.f32 %v1375, %v1563
      %v2268 = vsub.f32 %v1379, %v1564
      %v2269 = vsub.f32 %v1385, %v1565
      %v2270 = vsub.f32 %v1389, %v1566
      %v2271 = vsub.f32 %v1395, %v1567
      %v2272 = vsub.f32 %v1399, %v1568
      %v2273 = vsub.f32 %v1405, %v1569
      %v2274 = vsub.f32 %v1409, %v1570
      %v2275 = vsub.f32 %v1415, %v1571
      %v2276 = vsub.f32 %v1419, %v1572
      %v2277 = vsub.f32 %v1425, %v1573
      %v2278 = vsub.f32 %v1429, %v1574
      %v2279 = vsub.f32 %v1435, %v1575
      %v2280 = vsub.f32 %v1439, %v1576
      %v2281 = vsub.f32 %v1445, %v1577
      %v2282 = vsub.f32 %v1449, %v1578
      %v2283 = vsub.f32 %v1455, %v1579
      %v2284 = vsub.f32 %v1459, %v1580
      %v2285 = vsub.f32 %v1465, %v1581
      %v2286 = vsub.f32 %v1469, %v1582
      %v2287 = vsub.f32 %v1475, %v1583
      %v2288 = vsub.f32 %v1479, %v1584
      %v2289 = vsub.f32 %v1485, %v1585
      %v2290 = vsub.f32 %v1489, %v1586
      %v2291 = vmul.f32 %v2259, 1.442695
      %v2292 = vpow.pop %v2291
      %v2293 = vmul.f32 %v2260, 1.442695
      %v2294 = vpow.pop %v2293
      %v2295 = vmul.f32 %v2261, 1.442695
      %v2296 = vpow.pop %v2295
      %v2297 = vmul.f32 %v2262, 1.442695
      %v2298 = vpow.pop %v2297
      %v2299 = vmul.f32 %v2263, 1.442695
      %v2300 = vpow.pop %v2299
      %v2301 = vmul.f32 %v2264, 1.442695
      %v2302 = vpow.pop %v2301
      %v2303 = vmul.f32 %v2265, 1.442695
      %v2304 = vpow.pop %v2303
      %v2305 = vmul.f32 %v2266, 1.442695
      %v2306 = vpow.pop %v2305
      %v2307 = vmul.f32 %v2267, 1.442695
      %v2308 = vpow.pop %v2307
      %v2309 = vmul.f32 %v2268, 1.442695
      %v2310 = vpow.pop %v2309
      %v2311 = vmul.f32 %v2269, 1.442695
      %v2312 = vpow.pop %v2311
      %v2313 = vmul.f32 %v2270, 1.442695
      %v2314 = vpow.pop %v2313
      %v2315 = vmul.f32 %v2271, 1.442695
      %v2316 = vpow.pop %v2315
      %v2317 = vmul.f32 %v2272, 1.442695
      %v2318 = vpow.pop %v2317
      %v2319 = vmul.f32 %v2273, 1.442695
      %v2320 = vpow.pop %v2319
      %v2321 = vmul.f32 %v2274, 1.442695
      %v2322 = vpow.pop %v2321
      %v2323 = vmul.f32 %v2275, 1.442695
      %v2324 = vpow.pop %v2323
      %v2325 = vmul.f32 %v2276, 1.442695
      %v2326 = vpow.pop %v2325
      %v2327 = vmul.f32 %v2277, 1.442695
      %v2328 = vpow.pop %v2327
      %v2329 = vmul.f32 %v2278, 1.442695
      %v2330 = vpow.pop %v2329
      %v2331 = vmul.f32 %v2279, 1.442695
      %v2332 = vpow.pop %v2331
      %v2333 = vmul.f32 %v2280, 1.442695
      %v2334 = vpow.pop %v2333
      %v2335 = vmul.f32 %v2281, 1.442695
      %v2336 = vpow.pop %v2335
      %v2337 = vmul.f32 %v2282, 1.442695
      %v2338 = vpow.pop %v2337
      %v2339 = vmul.f32 %v2283, 1.442695
      %v2340 = vpow.pop %v2339
      %v2341 = vmul.f32 %v2284, 1.442695
      %v2342 = vpow.pop %v2341
      %v2343 = vmul.f32 %v2285, 1.442695
      %v2344 = vpow.pop %v2343
      %v2345 = vmul.f32 %v2286, 1.442695
      %v2346 = vpow.pop %v2345
      %v2347 = vmul.f32 %v2287, 1.442695
      %v2348 = vpow.pop %v2347
      %v2349 = vmul.f32 %v2288, 1.442695
      %v2350 = vpow.pop %v2349
      %v2351 = vmul.f32 %v2289, 1.442695
      %v2352 = vpow.pop %v2351
      %v2353 = vmul.f32 %v2290, 1.442695
      %v2354 = vpow.pop %v2353
      %v2355 = vadd.f32 %v2131, %v2292
      %v2356 = vadd.f32 %v2132, %v2294
      %v2357 = vadd.f32 %v2133, %v2296
      %v2358 = vadd.f32 %v2134, %v2298
      %v2359 = vadd.f32 %v2135, %v2300
      %v2360 = vadd.f32 %v2136, %v2302
      %v2361 = vadd.f32 %v2137, %v2304
      %v2362 = vadd.f32 %v2138, %v2306
      %v2363 = vadd.f32 %v2139, %v2308
      %v2364 = vadd.f32 %v2140, %v2310
      %v2365 = vadd.f32 %v2141, %v2312
      %v2366 = vadd.f32 %v2142, %v2314
      %v2367 = vadd.f32 %v2143, %v2316
      %v2368 = vadd.f32 %v2144, %v2318
      %v2369 = vadd.f32 %v2145, %v2320
      %v2370 = vadd.f32 %v2146, %v2322
      %v2371 = vadd.f32 %v2147, %v2324
      %v2372 = vadd.f32 %v2148, %v2326
      %v2373 = vadd.f32 %v2149, %v2328
      %v2374 = vadd.f32 %v2150, %v2330
      %v2375 = vadd.f32 %v2151, %v2332
      %v2376 = vadd.f32 %v2152, %v2334
      %v2377 = vadd.f32 %v2153, %v2336
      %v2378 = vadd.f32 %v2154, %v2338
      %v2379 = vadd.f32 %v2155, %v2340
      %v2380 = vadd.f32 %v2156, %v2342
      %v2381 = vadd.f32 %v2157, %v2344
      %v2382 = vadd.f32 %v2158, %v2346
      %v2383 = vadd.f32 %v2159, %v2348
      %v2384 = vadd.f32 %v2160, %v2350
      %v2385 = vadd.f32 %v2161, %v2352
      %v2386 = vadd.f32 %v2162, %v2354
      %vm2387 = vcmp.eq.f32.partialorder %v283, 3.0
      %vm2388 = vcmp.eq.f32.partialorder %v284, 3.0
      %vm2389 = vcmp.eq.f32.partialorder %v285, 3.0
      %vm2390 = vcmp.eq.f32.partialorder %v286, 3.0
      %vm2391 = vcmp.eq.f32.partialorder %v287, 3.0
      %vm2392 = vcmp.eq.f32.partialorder %v288, 3.0
      %vm2393 = vcmp.eq.f32.partialorder %v289, 3.0
      %vm2394 = vcmp.eq.f32.partialorder %v290, 3.0
      %vm2395 = vcmp.eq.f32.partialorder %v291, 3.0
      %vm2396 = vcmp.eq.f32.partialorder %v292, 3.0
      %vm2397 = vcmp.eq.f32.partialorder %v293, 3.0
      %vm2398 = vcmp.eq.f32.partialorder %v294, 3.0
      %vm2399 = vcmp.eq.f32.partialorder %v295, 3.0
      %vm2400 = vcmp.eq.f32.partialorder %v296, 3.0
      %vm2401 = vcmp.eq.f32.partialorder %v297, 3.0
      %vm2402 = vcmp.eq.f32.partialorder %v298, 3.0
      %vm2403 = vcmp.eq.f32.partialorder %v299, 3.0
      %vm2404 = vcmp.eq.f32.partialorder %v300, 3.0
      %vm2405 = vcmp.eq.f32.partialorder %v301, 3.0
      %vm2406 = vcmp.eq.f32.partialorder %v302, 3.0
      %vm2407 = vcmp.eq.f32.partialorder %v303, 3.0
      %vm2408 = vcmp.eq.f32.partialorder %v304, 3.0
      %vm2409 = vcmp.eq.f32.partialorder %v305, 3.0
      %vm2410 = vcmp.eq.f32.partialorder %v306, 3.0
      %vm2411 = vcmp.eq.f32.partialorder %v307, 3.0
      %vm2412 = vcmp.eq.f32.partialorder %v308, 3.0
      %vm2413 = vcmp.eq.f32.partialorder %v309, 3.0
      %vm2414 = vcmp.eq.f32.partialorder %v310, 3.0
      %vm2415 = vcmp.eq.f32.partialorder %v311, 3.0
      %vm2416 = vcmp.eq.f32.partialorder %v312, 3.0
      %vm2417 = vcmp.eq.f32.partialorder %v313, 3.0
      %vm2418 = vcmp.eq.f32.partialorder %v314, 3.0
      %v2419 = vsel %vm2387, %v1335, 0.0
      %v2420 = vsel %vm2388, %v1339, 0.0
      %v2421 = vsel %vm2389, %v1345, 0.0
      %v2422 = vsel %vm2390, %v1349, 0.0
      %v2423 = vsel %vm2391, %v1355, 0.0
      %v2424 = vsel %vm2392, %v1359, 0.0
      %v2425 = vsel %vm2393, %v1365, 0.0
      %v2426 = vsel %vm2394, %v1369, 0.0
      %v2427 = vsel %vm2395, %v1375, 0.0
      %v2428 = vsel %vm2396, %v1379, 0.0
      %v2429 = vsel %vm2397, %v1385, 0.0
      %v2430 = vsel %vm2398, %v1389, 0.0
      %v2431 = vsel %vm2399, %v1395, 0.0
      %v2432 = vsel %vm2400, %v1399, 0.0
      %v2433 = vsel %vm2401, %v1405, 0.0
      %v2434 = vsel %vm2402, %v1409, 0.0
      %v2435 = vsel %vm2403, %v1415, 0.0
      %v2436 = vsel %vm2404, %v1419, 0.0
      %v2437 = vsel %vm2405, %v1425, 0.0
      %v2438 = vsel %vm2406, %v1429, 0.0
      %v2439 = vsel %vm2407, %v1435, 0.0
      %v2440 = vsel %vm2408, %v1439, 0.0
      %v2441 = vsel %vm2409, %v1445, 0.0
      %v2442 = vsel %vm2410, %v1449, 0.0
      %v2443 = vsel %vm2411, %v1455, 0.0
      %v2444 = vsel %vm2412, %v1459, 0.0
      %v2445 = vsel %vm2413, %v1465, 0.0
      %v2446 = vsel %vm2414, %v1469, 0.0
      %v2447 = vsel %vm2415, %v1475, 0.0
      %v2448 = vsel %vm2416, %v1479, 0.0
      %v2449 = vsel %vm2417, %v1485, 0.0
      %v2450 = vsel %vm2418, %v1489, 0.0
      %v2451 = vadd.f32 %v2227, %v2419
      %v2452 = vadd.f32 %v2228, %v2420
      %v2453 = vadd.f32 %v2229, %v2421
      %v2454 = vadd.f32 %v2230, %v2422
      %v2455 = vadd.f32 %v2231, %v2423
      %v2456 = vadd.f32 %v2232, %v2424
      %v2457 = vadd.f32 %v2233, %v2425
      %v2458 = vadd.f32 %v2234, %v2426
      %v2459 = vadd.f32 %v2235, %v2427
      %v2460 = vadd.f32 %v2236, %v2428
      %v2461 = vadd.f32 %v2237, %v2429
      %v2462 = vadd.f32 %v2238, %v2430
      %v2463 = vadd.f32 %v2239, %v2431
      %v2464 = vadd.f32 %v2240, %v2432
      %v2465 = vadd.f32 %v2241, %v2433
      %v2466 = vadd.f32 %v2242, %v2434
      %v2467 = vadd.f32 %v2243, %v2435
      %v2468 = vadd.f32 %v2244, %v2436
      %v2469 = vadd.f32 %v2245, %v2437
      %v2470 = vadd.f32 %v2246, %v2438
      %v2471 = vadd.f32 %v2247, %v2439
      %v2472 = vadd.f32 %v2248, %v2440
      %v2473 = vadd.f32 %v2249, %v2441
      %v2474 = vadd.f32 %v2250, %v2442
      %v2475 = vadd.f32 %v2251, %v2443
      %v2476 = vadd.f32 %v2252, %v2444
      %v2477 = vadd.f32 %v2253, %v2445
      %v2478 = vadd.f32 %v2254, %v2446
      %v2479 = vadd.f32 %v2255, %v2447
      %v2480 = vadd.f32 %v2256, %v2448
      %v2481 = vadd.f32 %v2257, %v2449
      %v2482 = vadd.f32 %v2258, %v2450
      %v2483 = vsub.f32 %v2451, %v1555
      %v2484 = vsub.f32 %v2452, %v1556
      %v2485 = vsub.f32 %v2453, %v1557
      %v2486 = vsub.f32 %v2454, %v1558
      %v2487 = vsub.f32 %v2455, %v1559
      %v2488 = vsub.f32 %v2456, %v1560
      %v2489 = vsub.f32 %v2457, %v1561
      %v2490 = vsub.f32 %v2458, %v1562
      %v2491 = vsub.f32 %v2459, %v1563
      %v2492 = vsub.f32 %v2460, %v1564
      %v2493 = vsub.f32 %v2461, %v1565
      %v2494 = vsub.f32 %v2462, %v1566
      %v2495 = vsub.f32 %v2463, %v1567
      %v2496 = vsub.f32 %v2464, %v1568
      %v2497 = vsub.f32 %v2465, %v1569
      %v2498 = vsub.f32 %v2466, %v1570
      %v2499 = vsub.f32 %v2467, %v1571
      %v2500 = vsub.f32 %v2468, %v1572
      %v2501 = vsub.f32 %v2469, %v1573
      %v2502 = vsub.f32 %v2470, %v1574
      %v2503 = vsub.f32 %v2471, %v1575
      %v2504 = vsub.f32 %v2472, %v1576
      %v2505 = vsub.f32 %v2473, %v1577
      %v2506 = vsub.f32 %v2474, %v1578
      %v2507 = vsub.f32 %v2475, %v1579
      %v2508 = vsub.f32 %v2476, %v1580
      %v2509 = vsub.f32 %v2477, %v1581
      %v2510 = vsub.f32 %v2478, %v1582
      %v2511 = vsub.f32 %v2479, %v1583
      %v2512 = vsub.f32 %v2480, %v1584
      %v2513 = vsub.f32 %v2481, %v1585
      %v2514 = vsub.f32 %v2482, %v1586
      %v2515 = vlog2.pop %v2355
      %v2516 = vmul.f32 %v2515, 0.6931472
      %v2517 = vlog2.pop %v2356
      %v2518 = vmul.f32 %v2517, 0.6931472
      %v2519 = vlog2.pop %v2357
      %v2520 = vmul.f32 %v2519, 0.6931472
      %v2521 = vlog2.pop %v2358
      %v2522 = vmul.f32 %v2521, 0.6931472
      %v2523 = vlog2.pop %v2359
      %v2524 = vmul.f32 %v2523, 0.6931472
      %v2525 = vlog2.pop %v2360
      %v2526 = vmul.f32 %v2525, 0.6931472
      %v2527 = vlog2.pop %v2361
      %v2528 = vmul.f32 %v2527, 0.6931472
      %v2529 = vlog2.pop %v2362
      %v2530 = vmul.f32 %v2529, 0.6931472
      %v2531 = vlog2.pop %v2363
      %v2532 = vmul.f32 %v2531, 0.6931472
      %v2533 = vlog2.pop %v2364
      %v2534 = vmul.f32 %v2533, 0.6931472
      %v2535 = vlog2.pop %v2365
      %v2536 = vmul.f32 %v2535, 0.6931472
      %v2537 = vlog2.pop %v2366
      %v2538 = vmul.f32 %v2537, 0.6931472
      %v2539 = vlog2.pop %v2367
      %v2540 = vmul.f32 %v2539, 0.6931472
      %v2541 = vlog2.pop %v2368
      %v2542 = vmul.f32 %v2541, 0.6931472
      %v2543 = vlog2.pop %v2369
      %v2544 = vmul.f32 %v2543, 0.6931472
      %v2545 = vlog2.pop %v2370
      %v2546 = vmul.f32 %v2545, 0.6931472
      %v2547 = vlog2.pop %v2371
      %v2548 = vmul.f32 %v2547, 0.6931472
      %v2549 = vlog2.pop %v2372
      %v2550 = vmul.f32 %v2549, 0.6931472
      %v2551 = vlog2.pop %v2373
      %v2552 = vmul.f32 %v2551, 0.6931472
      %v2553 = vlog2.pop %v2374
      %v2554 = vmul.f32 %v2553, 0.6931472
      %v2555 = vlog2.pop %v2375
      %v2556 = vmul.f32 %v2555, 0.6931472
      %v2557 = vlog2.pop %v2376
      %v2558 = vmul.f32 %v2557, 0.6931472
      %v2559 = vlog2.pop %v2377
      %v2560 = vmul.f32 %v2559, 0.6931472
      %v2561 = vlog2.pop %v2378
      %v2562 = vmul.f32 %v2561, 0.6931472
      %v2563 = vlog2.pop %v2379
      %v2564 = vmul.f32 %v2563, 0.6931472
      %v2565 = vlog2.pop %v2380
      %v2566 = vmul.f32 %v2565, 0.6931472
      %v2567 = vlog2.pop %v2381
      %v2568 = vmul.f32 %v2567, 0.6931472
      %v2569 = vlog2.pop %v2382
      %v2570 = vmul.f32 %v2569, 0.6931472
      %v2571 = vlog2.pop %v2383
      %v2572 = vmul.f32 %v2571, 0.6931472
      %v2573 = vlog2.pop %v2384
      %v2574 = vmul.f32 %v2573, 0.6931472
      %v2575 = vlog2.pop %v2385
      %v2576 = vmul.f32 %v2575, 0.6931472
      %v2577 = vlog2.pop %v2386
      %v2578 = vmul.f32 %v2577, 0.6931472
      %v2579 = vsub.f32 %v2483, %v2516
      %v2580 = vsub.f32 %v2484, %v2518
      %v2581 = vsub.f32 %v2485, %v2520
      %v2582 = vsub.f32 %v2486, %v2522
      %v2583 = vsub.f32 %v2487, %v2524
      %v2584 = vsub.f32 %v2488, %v2526
      %v2585 = vsub.f32 %v2489, %v2528
      %v2586 = vsub.f32 %v2490, %v2530
      %v2587 = vsub.f32 %v2491, %v2532
      %v2588 = vsub.f32 %v2492, %v2534
      %v2589 = vsub.f32 %v2493, %v2536
      %v2590 = vsub.f32 %v2494, %v2538
      %v2591 = vsub.f32 %v2495, %v2540
      %v2592 = vsub.f32 %v2496, %v2542
      %v2593 = vsub.f32 %v2497, %v2544
      %v2594 = vsub.f32 %v2498, %v2546
      %v2595 = vsub.f32 %v2499, %v2548
      %v2596 = vsub.f32 %v2500, %v2550
      %v2597 = vsub.f32 %v2501, %v2552
      %v2598 = vsub.f32 %v2502, %v2554
      %v2599 = vsub.f32 %v2503, %v2556
      %v2600 = vsub.f32 %v2504, %v2558
      %v2601 = vsub.f32 %v2505, %v2560
      %v2602 = vsub.f32 %v2506, %v2562
      %v2603 = vsub.f32 %v2507, %v2564
      %v2604 = vsub.f32 %v2508, %v2566
      %v2605 = vsub.f32 %v2509, %v2568
      %v2606 = vsub.f32 %v2510, %v2570
      %v2607 = vsub.f32 %v2511, %v2572
      %v2608 = vsub.f32 %v2512, %v2574
      %v2609 = vsub.f32 %v2513, %v2576
      %v2610 = vsub.f32 %v2514, %v2578
      %v2611 = vlaneseq
      %v2612 = vand.u32 %v2611, 127
      %vm2613 = vcmp.lt.s32.totalorder %v2612, 8
      %v2614 = vsel %vm2613, %v2579, 0.0
      %v2615 = vsel %vm2613, %v2580, 0.0
      %v2616 = vsel %vm2613, %v2581, 0.0
      %v2617 = vsel %vm2613, %v2582, 0.0
      %v2618 = vsel %vm2613, %v2583, 0.0
      %v2619 = vsel %vm2613, %v2584, 0.0
      %v2620 = vsel %vm2613, %v2585, 0.0
      %v2621 = vsel %vm2613, %v2586, 0.0
      %v2622 = vsel %vm2613, %v2587, 0.0
      %v2623 = vsel %vm2613, %v2588, 0.0
      %v2624 = vsel %vm2613, %v2589, 0.0
      %v2625 = vsel %vm2613, %v2590, 0.0
      %v2626 = vsel %vm2613, %v2591, 0.0
      %v2627 = vsel %vm2613, %v2592, 0.0
      %v2628 = vsel %vm2613, %v2593, 0.0
      %v2629 = vsel %vm2613, %v2594, 0.0
      %v2630 = vsel %vm2613, %v2595, 0.0
      %v2631 = vsel %vm2613, %v2596, 0.0
      %v2632 = vsel %vm2613, %v2597, 0.0
      %v2633 = vsel %vm2613, %v2598, 0.0
      %v2634 = vsel %vm2613, %v2599, 0.0
      %v2635 = vsel %vm2613, %v2600, 0.0
      %v2636 = vsel %vm2613, %v2601, 0.0
      %v2637 = vsel %vm2613, %v2602, 0.0
      %v2638 = vsel %vm2613, %v2603, 0.0
      %v2639 = vsel %vm2613, %v2604, 0.0
      %v2640 = vsel %vm2613, %v2605, 0.0
      %v2641 = vsel %vm2613, %v2606, 0.0
      %v2642 = vsel %vm2613, %v2607, 0.0
      %v2643 = vsel %vm2613, %v2608, 0.0
      %v2644 = vsel %vm2613, %v2609, 0.0
      %v2645 = vsel %vm2613, %v2610, 0.0
      %2646 = vst [vmem:[%s280] sm:$0xff] %v2614
      %2647 = vst [vmem:[%s280 + $0x8] sm:$0xff] %v2615
      %2648 = vst [vmem:[%s280 + $0x10] sm:$0xff] %v2616
      %2649 = vst [vmem:[%s280 + $0x18] sm:$0xff] %v2617
      %2650 = vst [vmem:[%s280 + $0x20] sm:$0xff] %v2618
      %2651 = vst [vmem:[%s280 + $0x28] sm:$0xff] %v2619
      %2652 = vst [vmem:[%s280 + $0x30] sm:$0xff] %v2620
      %2653 = vst [vmem:[%s280 + $0x38] sm:$0xff] %v2621
      %2654 = vst [vmem:[%s280 + $0x40] sm:$0xff] %v2622
      %2655 = vst [vmem:[%s280 + $0x48] sm:$0xff] %v2623
      %2656 = vst [vmem:[%s280 + $0x50] sm:$0xff] %v2624
      %2657 = vst [vmem:[%s280 + $0x58] sm:$0xff] %v2625
      %2658 = vst [vmem:[%s280 + $0x60] sm:$0xff] %v2626
      %2659 = vst [vmem:[%s280 + $0x68] sm:$0xff] %v2627
      %2660 = vst [vmem:[%s280 + $0x70] sm:$0xff] %v2628
      %2661 = vst [vmem:[%s280 + $0x78] sm:$0xff] %v2629
      %2662 = vst [vmem:[%s280 + $0x80] sm:$0xff] %v2630
      %2663 = vst [vmem:[%s280 + $0x88] sm:$0xff] %v2631
      %2664 = vst [vmem:[%s280 + $0x90] sm:$0xff] %v2632
      %2665 = vst [vmem:[%s280 + $0x98] sm:$0xff] %v2633
      %2666 = vst [vmem:[%s280 + $0xa0] sm:$0xff] %v2634
      %2667 = vst [vmem:[%s280 + $0xa8] sm:$0xff] %v2635
      %2668 = vst [vmem:[%s280 + $0xb0] sm:$0xff] %v2636
      %2669 = vst [vmem:[%s280 + $0xb8] sm:$0xff] %v2637
      %2670 = vst [vmem:[%s280 + $0xc0] sm:$0xff] %v2638
      %2671 = vst [vmem:[%s280 + $0xc8] sm:$0xff] %v2639
      %2672 = vst [vmem:[%s280 + $0xd0] sm:$0xff] %v2640
      %2673 = vst [vmem:[%s280 + $0xd8] sm:$0xff] %v2641
      %2674 = vst [vmem:[%s280 + $0xe0] sm:$0xff] %v2642
      %2675 = vst [vmem:[%s280 + $0xe8] sm:$0xff] %v2643
      %2676 = vst [vmem:[%s280 + $0xf0] sm:$0xff] %v2644
      %2677 = vst [vmem:[%s280 + $0xf8] sm:$0xff] %v2645
      %s2678 = smul.u32 32, %s18
      %p2679 = scmp.lt.s32.totalorder %s2678, 63
      %s2680 = scalar_select %p2679, %s2678, 63
      %s2681 = smul.addr %s2680, 8
      %s2682 = scalar_lea.vmem %s7, %s2681
      // Predicated region
      $region49: #{_lambda_.1} parent=47 // pred_check
        %p2683 = pneg %p188
      $region50: #{_lambda_.1} parent=47 // pred_check_branch
        %2685 = sbr.rel (%p2683) target = $region52
      $region51: #{_lambda_.1} parent=47 // pred_region
        %s2686 = smul.u32 32, %s18
      $region52: #{_lambda_.1} parent=47 // pred_fallthru
        _
    $region48: #{_lambda_.1} parent=5 // pred_fallthru
      _
    %p2687 = scmp.le.s32.totalorder 2, %s13
    // Predicated region
    $region53: #{_lambda_.1} parent=5 // pred_check
      %p2688 = pneg %p2687
    $region54: #{_lambda_.1} parent=5 // pred_check_branch
      %2690 = sbr.rel (%p2688) target = $region56
    $region55: #{_lambda_.1} parent=5 // pred_region
      %s2691 = ssub.s32 %s13, 2
      // Predicated region
      $region57: #{_lambda_.1} parent=55 // pred_check
        %p2692 = pneg %p194
      $region58: #{_lambda_.1} parent=55 // pred_check_branch
        %2694 = sbr.rel (%p2692) target = $region60
      $region59: #{_lambda_.1} parent=55 // pred_region
        %s2695 = smul.u32 32, %s19
        %p2696 = scmp.lt.s32.totalorder %s2695, 63
        %s2697 = scalar_select %p2696, %s2695, 63
        %s2698 = smul.addr %s2697, 8
        %s2699 = scalar_lea.vmem %s7, %s2698
      $region60: #{_lambda_.1} parent=55 // pred_fallthru
        _
    $region56: #{_lambda_.1} parent=5 // pred_fallthru
      _
  $region6: #{_lambda_.1} parent=0 // loop_footer
    %s17 = sadd.s32 1, %s13
  $region7: #{_lambda_.1} parent=0 // loop_footer_branch
    %12 = sbr.rel target = $region3
  $region8: #{_lambda_.1} parent=0 // loop_exit
    _

</llo_original>
